<compile_context>
chip_gen: v7x
topology: tpu7x:2x2x1
jax: 0.10.0
libtpu: 0.0.40
codegen_flags: <defaults>
</compile_context>

<pallas_src>
import functools

import jax
import jax.numpy as jnp
from jax import lax
from jax.experimental import pallas as pl
from jax.experimental.pallas import tpu as pltpu

_HI = lax.Precision.HIGHEST  # keep f32 matmul precision identical to the reference


def _cmc_kernel(tcol_ref, trow_ref, x1_ref, x2_ref, cent_ref, out_ref,
                gram_ref, l12_ref, *, margin, n, d_total, num_classes):
    k = pl.program_id(0)

    @pl.when(k == 0)
    def _init():
        gram_ref[...] = jnp.zeros_like(gram_ref)
        l12_ref[...] = jnp.zeros_like(l12_ref)

    t_col = tcol_ref[...]                                   # (n, 1) int32
    t_row = trow_ref[...]                                   # (1, n) int32
    mask = (t_col == t_row).astype(jnp.float32)             # (n, n) same-label pairs
    count = jnp.sum(mask, axis=1, keepdims=True)            # (n, 1) class sizes (>= 1)

    class_ids = lax.broadcasted_iota(jnp.int32, (n, num_classes), 1)
    onehot = (t_col == class_ids).astype(jnp.float32)       # (n, num_classes)

    x1 = x1_ref[...].astype(jnp.float32)                    # (n, td)
    x2 = x2_ref[...].astype(jnp.float32)                    # (n, td)
    ctab = cent_ref[...].astype(jnp.float32)                # (num_classes, td)

    # centers = self.centers.index_select(0, targets)  -> one-hot matmul gather
    csel = jnp.dot(onehot, ctab, precision=_HI, preferred_element_type=jnp.float32)
    # per-sample class means of each modality (the python loop in the PyTorch module)
    c_r = jnp.dot(mask, x1, precision=_HI, preferred_element_type=jnp.float32) / count
    c_t = jnp.dot(mask, x2, precision=_HI, preferred_element_type=jnp.float32) / count

    def _smooth_l1(x):  # nn.SmoothL1Loss element-wise term, beta = 1.0
        ax = jnp.abs(x)
        return jnp.where(ax < 1.0, 0.5 * ax * ax, ax - 0.5)

    # running SmoothL1 sums for loss1 + loss2 (kept per-row, reduced once at the end)
    l12_ref[...] += jnp.sum(_smooth_l1(c_r - csel) + _smooth_l1(c_t - csel),
                            axis=1, keepdims=True)

    # running gram matrix of the gathered centers (feature-dim chunked accumulation)
    gram_ref[...] += jnp.einsum("id,jd->ij", csel, csel,
                                precision=_HI, preferred_element_type=jnp.float32)

    @pl.when(k == pl.num_programs(0) - 1)
    def _finalize():
        g = gram_ref[...]
        row_i = lax.broadcasted_iota(jnp.int32, (n, n), 0)
        col_i = lax.broadcasted_iota(jnp.int32, (n, n), 1)
        eye = (row_i == col_i).astype(jnp.float32)
        sq_col = jnp.sum(g * eye, axis=1, keepdims=True)    # (n, 1): ||c_i||^2 = diag(G)
        sq_row = jnp.sum(g * eye, axis=0, keepdims=True)    # (1, n): ||c_j||^2 = diag(G)
        dist = jnp.sqrt(jnp.maximum(sq_col + sq_row - 2.0 * g, 1e-12))
        hinge = jnp.maximum(margin - dist, 0.0)
        loss3 = jnp.sum((1.0 - mask) * hinge * hinge) * (1.0 / (n * n))
        loss12 = jnp.sum(l12_ref[...]) * (1.0 / (n * d_total))
        out_ref[0, 0] = loss12 + loss3


def _pick_feature_tile(d):
    """Feature-dim tile: multiple of 128, prefer >=2 pipeline steps, ~<=512 lanes."""
    if d % 128 != 0:
        return d  # full-extent block (legal by the full-dim exception); tiny-D fallback
    for td in (512, 256, 128):
        if d % td == 0 and d // td >= 2:
            return td
    return d  # D itself is small enough to be one block


def cross_modal_center_contrastive_loss2(modal1, modal2, targets, centers, margin=0.5):
    """modal1, modal2: (n, D); targets: (n,) int; centers: (num_classes, D).

    Returns (loss, 0) matching the PyTorch module's forward.
    """
    n, d = modal1.shape
    num_classes, d_c = centers.shape
    assert d_c == d, "centers feature dim must match inputs"

    td = _pick_feature_tile(d)
    grid = (d // td,)

    t_col = targets.reshape(n, 1).astype(jnp.int32)
    t_row = targets.reshape(1, n).astype(jnp.int32)

    kernel = functools.partial(_cmc_kernel, margin=float(margin), n=n,
                               d_total=d, num_classes=num_classes)

    out = pl.pallas_call(
        kernel,
        out_shape=jax.ShapeDtypeStruct((1, 1), jnp.float32),
        grid_spec=pltpu.PrefetchScalarGridSpec(
            num_scalar_prefetch=0,
            grid=grid,
            in_specs=[
                pl.BlockSpec((n, 1), lambda k: (0, 0)),             # targets column
                pl.BlockSpec((1, n), lambda k: (0, 0)),             # targets row
                pl.BlockSpec((n, td), lambda k: (0, k)),            # modal1 chunk
                pl.BlockSpec((n, td), lambda k: (0, k)),            # modal2 chunk
                pl.BlockSpec((num_classes, td), lambda k: (0, k)),  # centers table chunk
            ],
            out_specs=pl.BlockSpec(memory_space=pltpu.MemorySpace.SMEM),
            scratch_shapes=[
                pltpu.VMEM((n, n), jnp.float32),   # gram of gathered centers
                pltpu.VMEM((n, 1), jnp.float32),   # per-row SmoothL1 running sums
            ],
        ),
        compiler_params=pltpu.CompilerParams(
            dimension_semantics=("arbitrary",),    # reduction axis with resident accumulators
        ),
    )(t_col, t_row, modal1, modal2, centers)

    return out[0, 0], jnp.float32(0.0)


def _reference(x1, x2, targets, centers, margin):
    """Pure-JAX port of the PyTorch forward (for the smoke check)."""
    m = (targets[:, None] == targets[None, :]).astype(jnp.float32)
    cnt = jnp.sum(m, axis=1, keepdims=True)
    c_r = jnp.matmul(m, x1, precision=_HI) / cnt
    c_t = jnp.matmul(m, x2, precision=_HI) / cnt
    csel = centers[targets]

    def sl1_mean(a, b):
        x = a - b
        ax = jnp.abs(x)
        return jnp.mean(jnp.where(ax < 1.0, 0.5 * ax * ax, ax - 0.5))

    loss1 = sl1_mean(c_r, csel)
    loss2 = sl1_mean(c_t, csel)
    sq = jnp.sum(csel * csel, axis=1, keepdims=True)
    dsq = jnp.maximum(sq + sq.T - 2.0 * jnp.matmul(csel, csel.T, precision=_HI), 1e-12)
    dist = jnp.sqrt(dsq)
    loss3 = jnp.mean((1.0 - m) * jnp.maximum(margin - dist, 0.0) ** 2)
    return loss1 + loss2 + loss3


if __name__ == "__main__":
    key = jax.random.PRNGKey(0)
    k1, k2, k3, k4 = jax.random.split(key, 4)

    n, feat_dim, num_classes, margin = 8, 512, 16, 0.5
    modal1 = jax.random.normal(k1, (n, feat_dim), dtype=jnp.float32)
    modal2 = jax.random.normal(k2, (n, feat_dim), dtype=jnp.float32)
    targets = jax.random.randint(k3, (n,), 0, num_classes, dtype=jnp.int32)
    centers = jax.random.uniform(k4, (num_classes, feat_dim), dtype=jnp.float32)  # ~torch.rand init

    loss, aux = cross_modal_center_contrastive_loss2(
        modal1, modal2, targets, centers, margin=margin)
    jax.block_until_ready(loss)

    ref = _reference(modal1, modal2, targets, centers, margin)
    assert jnp.allclose(loss, ref, rtol=1e-4, atol=1e-4), (loss, ref)

    print("KERNEL_OK")
</pallas_src>

<mosaic_0001>
module attributes {stable_mosaic.version = 11 : i64} {
  func.func @_cmc_kernel(%arg0: i32, %arg1: memref<8x1xi32, #tpu.memory_space<vmem>>, %arg2: memref<1x8xi32, #tpu.memory_space<vmem>>, %arg3: memref<8x256xf32, #tpu.memory_space<vmem>>, %arg4: memref<8x256xf32, #tpu.memory_space<vmem>>, %arg5: memref<16x256xf32, #tpu.memory_space<vmem>>, %arg6: memref<1x1xf32, #tpu.memory_space<smem>>, %arg7: memref<8x8xf32, #tpu.memory_space<vmem>>, %arg8: memref<8x1xf32, #tpu.memory_space<vmem>>) attributes {dimension_semantics = [#tpu.dimension_semantics<arbitrary>], iteration_bounds = array<i64: 2>, scalar_prefetch = 0 : i64, scratch_operands = 2 : i64, tpu.core_type = #tpu.core_type<tc>, window_params = [{pipeline_mode = #tpu.pipeline_mode<synchronous>, transform_indices = @transform_0, window_bounds = array<i64: 8, 1>}, {pipeline_mode = #tpu.pipeline_mode<synchronous>, transform_indices = @transform_1, window_bounds = array<i64: 1, 8>}, {transform_indices = @transform_2, window_bounds = array<i64: 8, 256>}, {transform_indices = @transform_3, window_bounds = array<i64: 8, 256>}, {transform_indices = @transform_4, window_bounds = array<i64: 16, 256>}, {transform_indices = @transform_5, window_bounds = array<i64: 1, 1>}]} {
    %c0_i32 = arith.constant 0 : i32
    %0 = arith.cmpi eq, %arg0, %c0_i32 : i32
    %1 = arith.extui %0 : i1 to i32
    %c0_i32_0 = arith.constant 0 : i32
    %2 = arith.cmpi ne, %1, %c0_i32_0 : i32
    scf.if %2 {
      %cst_30 = arith.constant 0.000000e+00 : f32
      %60 = vector.broadcast %cst_30 : f32 to vector<8x8xf32>
      %c0_31 = arith.constant 0 : index
      %c0_32 = arith.constant 0 : index
      %61 = vector.load %arg7[%c0_31, %c0_32] : memref<8x8xf32, #tpu.memory_space<vmem>>, vector<8x8xf32>
      tpu.vector_store %arg7[%c0_31, %c0_32], %60 {strides = array<i32>} : memref<8x8xf32, #tpu.memory_space<vmem>>, vector<8x8xf32>,
      %cst_33 = arith.constant 0.000000e+00 : f32
      %62 = vector.broadcast %cst_33 : f32 to vector<8x1xf32>
      %c0_34 = arith.constant 0 : index
      %c0_35 = arith.constant 0 : index
      %63 = vector.load %arg8[%c0_34, %c0_35] : memref<8x1xf32, #tpu.memory_space<vmem>>, vector<8x1xf32>
      tpu.vector_store %arg8[%c0_34, %c0_35], %62 {strides = array<i32>} : memref<8x1xf32, #tpu.memory_space<vmem>>, vector<8x1xf32>,
    } else {
    }
    %c0 = arith.constant 0 : index
    %c0_1 = arith.constant 0 : index
    %3 = vector.load %arg1[%c0, %c0_1] : memref<8x1xi32, #tpu.memory_space<vmem>>, vector<8x1xi32>
    %c0_2 = arith.constant 0 : index
    %c0_3 = arith.constant 0 : index
    %4 = vector.load %arg2[%c0_2, %c0_3] : memref<1x8xi32, #tpu.memory_space<vmem>>, vector<1x8xi32>
    %5 = vector.broadcast %3 : vector<8x1xi32> to vector<8x8xi32>
    %6 = vector.broadcast %4 : vector<1x8xi32> to vector<8x8xi32>
    %7 = arith.cmpi eq, %5, %6 : vector<8x8xi32>
    %8 = arith.extui %7 : vector<8x8xi1> to vector<8x8xi32>
    %9 = arith.sitofp %8 : vector<8x8xi32> to vector<8x8xf32>
    %cst = arith.constant dense<0.000000e+00> : vector<8xf32>
    %10 = vector.multi_reduction <add>, %9, %cst [1] : vector<8x8xf32> to vector<8xf32>
    %11 = vector.shape_cast %10 : vector<8xf32> to vector<8x1xf32>
    %12 = tpu.iota {dimensions = array<i32: 1>} : vector<8x16xi32>
    %13 = vector.broadcast %3 : vector<8x1xi32> to vector<8x16xi32>
    %14 = arith.cmpi eq, %13, %12 : vector<8x16xi32>
    %15 = arith.extui %14 : vector<8x16xi1> to vector<8x16xi32>
    %16 = arith.sitofp %15 : vector<8x16xi32> to vector<8x16xf32>
    %c0_4 = arith.constant 0 : index
    %c0_5 = arith.constant 0 : index
    %17 = vector.load %arg3[%c0_4, %c0_5] : memref<8x256xf32, #tpu.memory_space<vmem>>, vector<8x256xf32>
    %c0_6 = arith.constant 0 : index
    %c0_7 = arith.constant 0 : index
    %18 = vector.load %arg4[%c0_6, %c0_7] : memref<8x256xf32, #tpu.memory_space<vmem>>, vector<8x256xf32>
    %c0_8 = arith.constant 0 : index
    %c0_9 = arith.constant 0 : index
    %19 = vector.load %arg5[%c0_8, %c0_9] : memref<16x256xf32, #tpu.memory_space<vmem>>, vector<16x256xf32>
    %cst_10 = arith.constant dense<0.000000e+00> : vector<8x256xf32>
    %20 = tpu.matmul %16, %19, %cst_10 {dimension_numbers = #tpu.dot_dimension_numbers<[1], [0], [0], [1], [0, 0, 1, 1], [], []>, precision = #tpu.contract_precision<fp32>} : vector<8x16xf32>, vector<16x256xf32>, vector<8x256xf32> -> vector<8x256xf32>
    %cst_11 = arith.constant dense<0.000000e+00> : vector<8x256xf32>
    %21 = tpu.matmul %9, %17, %cst_11 {dimension_numbers = #tpu.dot_dimension_numbers<[1], [0], [0], [1], [0, 0, 1, 1], [], []>, precision = #tpu.contract_precision<fp32>} : vector<8x8xf32>, vector<8x256xf32>, vector<8x256xf32> -> vector<8x256xf32>
    %22 = vector.broadcast %11 : vector<8x1xf32> to vector<8x256xf32>
    %23 = arith.divf %21, %22 : vector<8x256xf32>
    %cst_12 = arith.constant dense<0.000000e+00> : vector<8x256xf32>
    %24 = tpu.matmul %9, %18, %cst_12 {dimension_numbers = #tpu.dot_dimension_numbers<[1], [0], [0], [1], [0, 0, 1, 1], [], []>, precision = #tpu.contract_precision<fp32>} : vector<8x8xf32>, vector<8x256xf32>, vector<8x256xf32> -> vector<8x256xf32>
    %25 = vector.broadcast %11 : vector<8x1xf32> to vector<8x256xf32>
    %26 = arith.divf %24, %25 : vector<8x256xf32>
    %c0_13 = arith.constant 0 : index
    %c0_14 = arith.constant 0 : index
    %27 = vector.load %arg8[%c0_13, %c0_14] : memref<8x1xf32, #tpu.memory_space<vmem>>, vector<8x1xf32>
    %28 = arith.subf %23, %20 : vector<8x256xf32>
    %29 = math.absf %28 : vector<8x256xf32>
    %cst_15 = arith.constant 1.000000e+00 : f32
    %30 = vector.broadcast %cst_15 : f32 to vector<8x256xf32>
    %31 = arith.cmpf olt, %29, %30 : vector<8x256xf32>
    %cst_16 = arith.constant 5.000000e-01 : f32
    %32 = vector.broadcast %cst_16 : f32 to vector<8x256xf32>
    %33 = arith.mulf %32, %29 : vector<8x256xf32>
    %34 = arith.mulf %33, %29 : vector<8x256xf32>
    %cst_17 = arith.constant 5.000000e-01 : f32
    %35 = vector.broadcast %cst_17 : f32 to vector<8x256xf32>
    %36 = arith.subf %29, %35 : vector<8x256xf32>
    %37 = arith.select %31, %34, %36 : vector<8x256xi1>, vector<8x256xf32>
    %38 = arith.subf %26, %20 : vector<8x256xf32>
    %39 = math.absf %38 : vector<8x256xf32>
    %cst_18 = arith.constant 1.000000e+00 : f32
    %40 = vector.broadcast %cst_18 : f32 to vector<8x256xf32>
    %41 = arith.cmpf olt, %39, %40 : vector<8x256xf32>
    %cst_19 = arith.constant 5.000000e-01 : f32
    %42 = vector.broadcast %cst_19 : f32 to vector<8x256xf32>
    %43 = arith.mulf %42, %39 : vector<8x256xf32>
    %44 = arith.mulf %43, %39 : vector<8x256xf32>
    %cst_20 = arith.constant 5.000000e-01 : f32
    %45 = vector.broadcast %cst_20 : f32 to vector<8x256xf32>
    %46 = arith.subf %39, %45 : vector<8x256xf32>
    %47 = arith.select %41, %44, %46 : vector<8x256xi1>, vector<8x256xf32>
    %48 = arith.addf %37, %47 : vector<8x256xf32>
    %cst_21 = arith.constant dense<0.000000e+00> : vector<8xf32>
    %49 = vector.multi_reduction <add>, %48, %cst_21 [1] : vector<8x256xf32> to vector<8xf32>
    %50 = vector.shape_cast %49 : vector<8xf32> to vector<8x1xf32>
    %51 = arith.addf %27, %50 : vector<8x1xf32>
    %c0_22 = arith.constant 0 : index
    %c0_23 = arith.constant 0 : index
    %52 = vector.load %arg8[%c0_22, %c0_23] : memref<8x1xf32, #tpu.memory_space<vmem>>, vector<8x1xf32>
    tpu.vector_store %arg8[%c0_22, %c0_23], %51 {strides = array<i32>} : memref<8x1xf32, #tpu.memory_space<vmem>>, vector<8x1xf32>,
    %c0_24 = arith.constant 0 : index
    %c0_25 = arith.constant 0 : index
    %53 = vector.load %arg7[%c0_24, %c0_25] : memref<8x8xf32, #tpu.memory_space<vmem>>, vector<8x8xf32>
    "tpu.trace_start"() <{level = 10 : i32, message = "id,jd->ij"}> : () -> ()
    %cst_26 = arith.constant dense<0.000000e+00> : vector<8x8xf32>
    %54 = tpu.matmul %20, %20, %cst_26 {dimension_numbers = #tpu.dot_dimension_numbers<[1], [1], [0], [0], [0, 0, 1, 0], [], []>, precision = #tpu.contract_precision<fp32>} : vector<8x256xf32>, vector<8x256xf32>, vector<8x8xf32> -> vector<8x8xf32>
    "tpu.trace_stop"() : () -> ()
    %55 = arith.addf %53, %54 : vector<8x8xf32>
    %c0_27 = arith.constant 0 : index
    %c0_28 = arith.constant 0 : index
    %56 = vector.load %arg7[%c0_27, %c0_28] : memref<8x8xf32, #tpu.memory_space<vmem>>, vector<8x8xf32>
    tpu.vector_store %arg7[%c0_27, %c0_28], %55 {strides = array<i32>} : memref<8x8xf32, #tpu.memory_space<vmem>>, vector<8x8xf32>,
    %c1_i32 = arith.constant 1 : i32
    %57 = arith.cmpi eq, %arg0, %c1_i32 : i32
    %58 = arith.extui %57 : i1 to i32
    %c0_i32_29 = arith.constant 0 : i32
    %59 = arith.cmpi ne, %58, %c0_i32_29 : i32
    scf.if %59 {
      %c0_30 = arith.constant 0 : index
      %c0_31 = arith.constant 0 : index
      %60 = vector.load %arg7[%c0_30, %c0_31] : memref<8x8xf32, #tpu.memory_space<vmem>>, vector<8x8xf32>
      %61 = tpu.iota {dimensions = array<i32: 0>} : vector<8x8xi32>
      %62 = tpu.iota {dimensions = array<i32: 1>} : vector<8x8xi32>
      %63 = arith.cmpi eq, %61, %62 : vector<8x8xi32>
      %64 = arith.extui %63 : vector<8x8xi1> to vector<8x8xi32>
      %65 = arith.sitofp %64 : vector<8x8xi32> to vector<8x8xf32>
      %66 = arith.mulf %60, %65 : vector<8x8xf32>
      %cst_32 = arith.constant dense<0.000000e+00> : vector<8xf32>
      %67 = vector.multi_reduction <add>, %66, %cst_32 [1] : vector<8x8xf32> to vector<8xf32>
      %68 = vector.shape_cast %67 : vector<8xf32> to vector<8x1xf32>
      %69 = arith.mulf %60, %65 : vector<8x8xf32>
      %cst_33 = arith.constant dense<0.000000e+00> : vector<8xf32>
      %70 = vector.multi_reduction <add>, %69, %cst_33 [0] : vector<8x8xf32> to vector<8xf32>
      %71 = vector.shape_cast %70 : vector<8xf32> to vector<1x8xf32>
      %72 = vector.broadcast %68 : vector<8x1xf32> to vector<8x8xf32>
      %73 = vector.broadcast %71 : vector<1x8xf32> to vector<8x8xf32>
      %74 = arith.addf %72, %73 : vector<8x8xf32>
      %cst_34 = arith.constant 2.000000e+00 : f32
      %75 = vector.broadcast %cst_34 : f32 to vector<8x8xf32>
      %76 = arith.mulf %75, %60 : vector<8x8xf32>
      %77 = arith.subf %74, %76 : vector<8x8xf32>
      %cst_35 = arith.constant 9.99999996E-13 : f32
      %78 = vector.broadcast %cst_35 : f32 to vector<8x8xf32>
      %79 = arith.maximumf %77, %78 : vector<8x8xf32>
      %80 = math.sqrt %79 : vector<8x8xf32>
      %cst_36 = arith.constant 5.000000e-01 : f32
      %81 = vector.broadcast %cst_36 : f32 to vector<8x8xf32>
      %82 = arith.subf %81, %80 : vector<8x8xf32>
      %cst_37 = arith.constant 0.000000e+00 : f32
      %83 = vector.broadcast %cst_37 : f32 to vector<8x8xf32>
      %84 = arith.maximumf %82, %83 : vector<8x8xf32>
      %cst_38 = arith.constant 1.000000e+00 : f32
      %85 = vector.broadcast %cst_38 : f32 to vector<8x8xf32>
      %86 = arith.subf %85, %9 : vector<8x8xf32>
      %87 = arith.mulf %86, %84 : vector<8x8xf32>
      %88 = arith.mulf %87, %84 : vector<8x8xf32>
      %89 = vector.shape_cast %88 : vector<8x8xf32> to vector<1x8x8xf32>
      %cst_39 = arith.constant dense<0.000000e+00> : vector<1xf32>
      %90 = vector.multi_reduction <add>, %89, %cst_39 [1, 2] : vector<1x8x8xf32> to vector<1xf32>
      %91 = vector.shape_cast %90 : vector<1xf32> to vector<1x1x1xf32>
      %92 = vector.extract %91[0, 0, 0] : f32 from vector<1x1x1xf32>
      %cst_40 = arith.constant 1.562500e-02 : f32
      %93 = arith.mulf %92, %cst_40 : f32
      %c0_41 = arith.constant 0 : index
      %c0_42 = arith.constant 0 : index
      %94 = vector.load %arg8[%c0_41, %c0_42] : memref<8x1xf32, #tpu.memory_space<vmem>>, vector<8x1xf32>
      %95 = vector.shape_cast %94 : vector<8x1xf32> to vector<1x8x1xf32>
      %cst_43 = arith.constant dense<0.000000e+00> : vector<1xf32>
      %96 = vector.multi_reduction <add>, %95, %cst_43 [1, 2] : vector<1x8x1xf32> to vector<1xf32>
      %97 = vector.shape_cast %96 : vector<1xf32> to vector<1x1x1xf32>
      %98 = vector.extract %97[0, 0, 0] : f32 from vector<1x1x1xf32>
      %cst_44 = arith.constant 2.44140625E-4 : f32
      %99 = arith.mulf %98, %cst_44 : f32
      %100 = arith.addf %99, %93 : f32
      %c0_45 = arith.constant 0 : index
      %c0_46 = arith.constant 0 : index
      %101 = memref.load %arg6[%c0_45, %c0_46] : memref<1x1xf32, #tpu.memory_space<smem>>
      memref.store %100, %arg6[%c0_45, %c0_46] : memref<1x1xf32, #tpu.memory_space<smem>>
    } else {
    }
    return
  }
  func.func @transform_0(%arg0: i32) -> (i32, i32) {
    %c0_i32 = arith.constant 0 : i32
    %c0_i32_0 = arith.constant 0 : i32
    %c0_i32_1 = arith.constant 0 : i32
    return %c0_i32, %c0_i32_0 : i32, i32
  }
  func.func @transform_1(%arg0: i32) -> (i32, i32) {
    %c0_i32 = arith.constant 0 : i32
    %c0_i32_0 = arith.constant 0 : i32
    %c0_i32_1 = arith.constant 0 : i32
    return %c0_i32, %c0_i32_0 : i32, i32
  }
  func.func @transform_2(%arg0: i32) -> (i32, i32) {
    %c0_i32 = arith.constant 0 : i32
    %c0_i32_0 = arith.constant 0 : i32
    return %c0_i32, %arg0 : i32, i32
  }
  func.func @transform_3(%arg0: i32) -> (i32, i32) {
    %c0_i32 = arith.constant 0 : i32
    %c0_i32_0 = arith.constant 0 : i32
    return %c0_i32, %arg0 : i32, i32
  }
  func.func @transform_4(%arg0: i32) -> (i32, i32) {
    %c0_i32 = arith.constant 0 : i32
    %c0_i32_0 = arith.constant 0 : i32
    return %c0_i32, %arg0 : i32, i32
  }
  func.func @transform_5(%arg0: i32) -> (i32, i32) {
    %c0_i32 = arith.constant 0 : i32
    %c0_i32_0 = arith.constant 0 : i32
    %c0_i32_1 = arith.constant 0 : i32
    return %c0_i32, %c0_i32_0 : i32, i32
  }
}

</mosaic_0001>

<llo_original>
// kernel: tpu_custom_call.1
$region0: #{tpu_custom_call.1}
  #allocation0 [shape = 'u32[]', space=smem, size = 0x4, offset = 0x4, fixed_abs, tag = 'smem constant byte address 0x4 - core index']
  #allocation1 [shape = 'u32[144,128]{1,0:T(1,128)}', space=vmem, size = 0x12000, scoped, tag = 'internal scratch']
  #allocation2 [shape = 'f32[8,8]{1,0:T(8,128)}', space=vmem, size = 0x1000, scoped, tag = 'scratch operand']
  #allocation3 [shape = 'f32[8,1]{1,0:T(8,128)}', space=vmem, size = 0x1000, scoped, tag = 'scratch operand']
  %s0 = inlined_call_operand.vmem [shape: s32[8,1], index: 0, kind: input, shape index: {}]
  %s1 = inlined_call_operand.vmem [shape: s32[1,8], index: 1, kind: input, shape index: {}]
  %s2 = inlined_call_operand.hbm [shape: f32[8,512], index: 2, kind: input, shape index: {}]
  %s3 = inlined_call_operand.hbm [shape: f32[8,512], index: 3, kind: input, shape index: {}]
  %s4 = inlined_call_operand.hbm [shape: f32[16,512], index: 4, kind: input, shape index: {}]
  %s5 = inlined_call_operand.hbm [shape: f32[1,1], index: 5, kind: output, shape index: {}]
  %s6 = sld [smem:[#allocation0]]
  $region73: #{tpu_custom_call.1} parent=0
    _
  %s8 = ssub.s32 1, %s6
  %s9 = scalar_select 0, %s8, %s6
  $region1: #{tpu_custom_call.1} parent=0
    #allocation4 [shape = 'u8[16384]{0}', space=vmem, size = 0x4000, scoped, tag = 'input window, operand 2']
    #allocation5 [shape = 's32[2]{0}', space=sflag, size = 0x8, scoped, tag = 'scoped memory for tpu_custom_call.1']
    #allocation6 [shape = 's32[2]{0}', space=sflag, size = 0x8, scoped, tag = 'scoped memory for tpu_custom_call.1']
    #allocation7 [shape = 'u8[16384]{0}', space=vmem, size = 0x4000, scoped, tag = 'input window, operand 3']
    #allocation8 [shape = 's32[2]{0}', space=sflag, size = 0x8, scoped, tag = 'scoped memory for tpu_custom_call.1']
    #allocation9 [shape = 'u8[32768]{0}', space=vmem, size = 0x8000, scoped, tag = 'input window, operand 4']
    #allocation10 [shape = 'u8[512]{0}', space=smem, size = 0x200, scoped, tag = 'output window, operand 0, single buffered']
    %10 = vsyncpa [#allocation5], 0
    %s11 = scalar_lea.sflag [#allocation5], 1
    %12 = vsyncpa %s11, 0
    %13 = vsyncpa [#allocation8], 0
    %s14 = scalar_lea.sflag [#allocation8], 1
    %15 = vsyncpa %s14, 0
    %16 = vsyncpa [#allocation6], 0
    loop: start=0, step=1, limit=4
    $region2: #{tpu_custom_call.1} parent=1 // loop_pre_header
      _
    $region3: #{tpu_custom_call.1} parent=1 // loop_header
      %s18 = sphi 0, %s22
      %p19 = scmp.ge.s32.totalorder %s18, 4
      %s26 = sphi 0, %s26
      %s28 = sphi 0, %s26
      %s29 = sphi 0, %s28
      %s43 = sphi 0, %s29
      %s47 = sphi 0, %s47
      %s49 = sphi 0, %s47
      %s50 = sphi 0, %s49
      %s64 = sphi 0, %s50
      %s70 = sphi 0, %s72
      %s73 = sphi 0, %s70
      %s74 = sphi 0, %s73
      %s90 = sphi 0, %s74
      %s96 = sphi 0, %s98
      %s99 = sphi 0, %s96
      %s100 = sphi 0, %s99
      %s116 = sphi 0, %s100
      %s122 = sphi 0, %s124
      %s125 = sphi 0, %s122
      %s126 = sphi 0, %s125
      %s142 = sphi 0, %s126
      %s146 = sphi 0, %s146
      %s148 = sphi 0, %s146
      %s149 = sphi 0, %s148
      %s163 = sphi 0, %s149
    $region4: #{tpu_custom_call.1} parent=1 // loop_header_branch
      %21 = sbr.rel (%p19) target = $region8
    $region5: #{tpu_custom_call.1} parent=1 // loop_body
      %s23 = ssub.s32 %s18, 1
      %s24 = ssub.s32 %s18, 2
      %s25 = sadd.s32 %s18, 1
      %s27 = sadd.s32 %s26, 1
      %p30 = scmp.eq.s32.totalorder %s18, 1
      %p31 = scmp.ne.s32.totalorder %s26, %s28
      %p32 = scmp.eq.s32.totalorder %s18, 0
      %p33 = por %p31, %p32
      %p34 = scmp.ne.s32.totalorder %s26, %s28
      %p35 = scmp.eq.s32.totalorder %s23, 1
      %p36 = por %p34, %p35
      %p37 = scmp.ne.s32.totalorder %s28, %s29
      %p38 = scmp.eq.s32.totalorder %s23, 0
      %p39 = por %p37, %p38
      %p40 = scmp.ne.s32.totalorder %s28, %s29
      %p41 = scmp.eq.s32.totalorder %s24, 1
      %p42 = por %p40, %p41
      %p44 = scmp.ne.s32.totalorder %s29, %s43
      %p45 = scmp.eq.s32.totalorder %s24, 0
      %p46 = por %p44, %p45
      %s48 = sadd.s32 %s47, 1
      %p51 = scmp.eq.s32.totalorder %s18, 1
      %p52 = scmp.ne.s32.totalorder %s47, %s49
      %p53 = scmp.eq.s32.totalorder %s18, 0
      %p54 = por %p52, %p53
      %p55 = scmp.ne.s32.totalorder %s47, %s49
      %p56 = scmp.eq.s32.totalorder %s23, 1
      %p57 = por %p55, %p56
      %p58 = scmp.ne.s32.totalorder %s49, %s50
      %p59 = scmp.eq.s32.totalorder %s23, 0
      %p60 = por %p58, %p59
      %p61 = scmp.ne.s32.totalorder %s49, %s50
      %p62 = scmp.eq.s32.totalorder %s24, 1
      %p63 = por %p61, %p62
      %p65 = scmp.ne.s32.totalorder %s50, %s64
      %p66 = scmp.eq.s32.totalorder %s24, 0
      %p67 = por %p65, %p66
      %s68 = ssub.s32 %s18, %s25
      %p69 = scmp.eq.s32.totalorder %s68, 0
      %s71 = sadd.s32 %s70, 1
      %s72 = scalar_select %p69, %s70, %s71
      %p75 = pneg %p69
      %p76 = scmp.eq.s32.totalorder %s18, 1
      %p77 = por %p75, %p76
      %p78 = scmp.ne.s32.totalorder %s70, %s73
      %p79 = scmp.eq.s32.totalorder %s18, 0
      %p80 = por %p78, %p79
      %p81 = scmp.ne.s32.totalorder %s70, %s73
      %p82 = scmp.eq.s32.totalorder %s23, 1
      %p83 = por %p81, %p82
      %p84 = scmp.ne.s32.totalorder %s73, %s74
      %p85 = scmp.eq.s32.totalorder %s23, 0
      %p86 = por %p84, %p85
      %p87 = scmp.ne.s32.totalorder %s73, %s74
      %p88 = scmp.eq.s32.totalorder %s24, 1
      %p89 = por %p87, %p88
      %p91 = scmp.ne.s32.totalorder %s74, %s90
      %p92 = scmp.eq.s32.totalorder %s24, 0
      %p93 = por %p91, %p92
      %s94 = ssub.s32 %s18, %s25
      %p95 = scmp.eq.s32.totalorder %s94, 0
      %s97 = sadd.s32 %s96, 1
      %s98 = scalar_select %p95, %s96, %s97
      %p101 = pneg %p95
      %p102 = scmp.eq.s32.totalorder %s18, 1
      %p103 = por %p101, %p102
      %p104 = scmp.ne.s32.totalorder %s96, %s99
      %p105 = scmp.eq.s32.totalorder %s18, 0
      %p106 = por %p104, %p105
      %p107 = scmp.ne.s32.totalorder %s96, %s99
      %p108 = scmp.eq.s32.totalorder %s23, 1
      %p109 = por %p107, %p108
      %p110 = scmp.ne.s32.totalorder %s99, %s100
      %p111 = scmp.eq.s32.totalorder %s23, 0
      %p112 = por %p110, %p111
      %p113 = scmp.ne.s32.totalorder %s99, %s100
      %p114 = scmp.eq.s32.totalorder %s24, 1
      %p115 = por %p113, %p114
      %p117 = scmp.ne.s32.totalorder %s100, %s116
      %p118 = scmp.eq.s32.totalorder %s24, 0
      %p119 = por %p117, %p118
      %s120 = ssub.s32 %s18, %s25
      %p121 = scmp.eq.s32.totalorder %s120, 0
      %s123 = sadd.s32 %s122, 1
      %s124 = scalar_select %p121, %s122, %s123
      %p127 = pneg %p121
      %p128 = scmp.eq.s32.totalorder %s18, 1
      %p129 = por %p127, %p128
      %p130 = scmp.ne.s32.totalorder %s122, %s125
      %p131 = scmp.eq.s32.totalorder %s18, 0
      %p132 = por %p130, %p131
      %p133 = scmp.ne.s32.totalorder %s122, %s125
      %p134 = scmp.eq.s32.totalorder %s23, 1
      %p135 = por %p133, %p134
      %p136 = scmp.ne.s32.totalorder %s125, %s126
      %p137 = scmp.eq.s32.totalorder %s23, 0
      %p138 = por %p136, %p137
      %p139 = scmp.ne.s32.totalorder %s125, %s126
      %p140 = scmp.eq.s32.totalorder %s24, 1
      %p141 = por %p139, %p140
      %p143 = scmp.ne.s32.totalorder %s126, %s142
      %p144 = scmp.eq.s32.totalorder %s24, 0
      %p145 = por %p143, %p144
      %s147 = sadd.s32 %s146, 1
      %p150 = scmp.eq.s32.totalorder %s18, 1
      %p151 = scmp.ne.s32.totalorder %s146, %s148
      %p152 = scmp.eq.s32.totalorder %s18, 0
      %p153 = por %p151, %p152
      %p154 = scmp.ne.s32.totalorder %s146, %s148
      %p155 = scmp.eq.s32.totalorder %s23, 1
      %p156 = por %p154, %p155
      %p157 = scmp.ne.s32.totalorder %s148, %s149
      %p158 = scmp.eq.s32.totalorder %s23, 0
      %p159 = por %p157, %p158
      %p160 = scmp.ne.s32.totalorder %s148, %s149
      %p161 = scmp.eq.s32.totalorder %s24, 1
      %p162 = por %p160, %p161
      %p164 = scmp.ne.s32.totalorder %s149, %s163
      %p165 = scmp.eq.s32.totalorder %s24, 0
      %p166 = por %p164, %p165
      %p167 = scmp.le.s32.totalorder 1, %s18
      %p168 = scmp.lt.s32.totalorder %s18, 3
      %p169 = pnand %p167, %p168
      %p170 = pneg %p169
      // Predicated region
      $region9: #{tpu_custom_call.1} parent=5 // pred_check
        _
      $region10: #{tpu_custom_call.1} parent=5 // pred_check_branch
        %172 = sbr.rel (%p169) target = $region12
      $region11: #{tpu_custom_call.1} parent=5 // pred_region
        %s173 = ssub.s32 %s18, 1
        // Predicated region
        $region13: #{tpu_custom_call.1} parent=11 // pred_check
          %p174 = pneg %p39
        $region14: #{tpu_custom_call.1} parent=11 // pred_check_branch
          %176 = sbr.rel (%p174) target = $region16
        $region15: #{tpu_custom_call.1} parent=11 // pred_region
          _
        $region16: #{tpu_custom_call.1} parent=11 // pred_fallthru
          _
        // Predicated region
        $region17: #{tpu_custom_call.1} parent=11 // pred_check
          %p177 = pneg %p60
        $region18: #{tpu_custom_call.1} parent=11 // pred_check_branch
          %179 = sbr.rel (%p177) target = $region20
        $region19: #{tpu_custom_call.1} parent=11 // pred_region
          _
        $region20: #{tpu_custom_call.1} parent=11 // pred_fallthru
          _
      $region12: #{tpu_custom_call.1} parent=5 // pred_fallthru
        _
      %p180 = scmp.lt.s32.totalorder %s18, 2
      // Predicated region
      $region21: #{tpu_custom_call.1} parent=5 // pred_check
        %p181 = pneg %p180
      $region22: #{tpu_custom_call.1} parent=5 // pred_check_branch
        %183 = sbr.rel (%p181) target = $region24
      $region23: #{tpu_custom_call.1} parent=5 // pred_region
        // Predicated region
        $region25: #{tpu_custom_call.1} parent=23 // pred_check
          %p184 = pneg %p80
        $region26: #{tpu_custom_call.1} parent=23 // pred_check_branch
          %186 = sbr.rel (%p184) target = $region28
        $region27: #{tpu_custom_call.1} parent=23 // pred_region
          %s187 = sand.u32 %s70, 1
          %s188 = scalar_lea.sflag [#allocation5], %s187
          %s189 = sand.u32 %s70, 1
          %s190 = smul.addr %s189, 16
          %s191 = scalar_lea.vmem [#allocation4], %s190
          %s192 = smul.u32 2, %s18
          %s194 = ssub.s32 256, 256
          %195 = vsyncadd %s188, %s194
          %s196 = smul.addr %s192, 128
          %s197 = scalar_lea.hbm %s2, %s196
          %s199 = sshll.u32 %s191, 4
          %s200 = int_to_ptr.vmem [resolvable:$true] %s199
          %202 = dma.hbm_to_vmem [thread:$0]  %s197, 256, %s200, %s188
        $region28: #{tpu_custom_call.1} parent=23 // pred_fallthru
          _
        // Predicated region
        $region29: #{tpu_custom_call.1} parent=23 // pred_check
          %p203 = pneg %p106
        $region30: #{tpu_custom_call.1} parent=23 // pred_check_branch
          %205 = sbr.rel (%p203) target = $region32
        $region31: #{tpu_custom_call.1} parent=23 // pred_region
          %s206 = sand.u32 %s18, 1
          %s207 = scalar_lea.sflag [#allocation8], %s206
          %s208 = sand.u32 %s96, 1
          %s209 = smul.addr %s208, 16
          %s210 = scalar_lea.vmem [#allocation7], %s209
          %s211 = smul.u32 2, %s18
          %s213 = ssub.s32 256, 256
          %214 = vsyncadd %s207, %s213
          %s215 = smul.addr %s211, 128
          %s216 = scalar_lea.hbm %s3, %s215
          %s218 = sshll.u32 %s210, 4
          %s219 = int_to_ptr.vmem [resolvable:$true] %s218
          %221 = dma.hbm_to_vmem [thread:$0]  %s216, 256, %s219, %s207
        $region32: #{tpu_custom_call.1} parent=23 // pred_fallthru
          _
        // Predicated region
        $region33: #{tpu_custom_call.1} parent=23 // pred_check
          %p222 = pneg %p132
        $region34: #{tpu_custom_call.1} parent=23 // pred_check_branch
          %224 = sbr.rel (%p222) target = $region36
        $region35: #{tpu_custom_call.1} parent=23 // pred_region
          %s225 = sand.u32 %s18, 1
          %s226 = scalar_lea.sflag [#allocation8], %s225
          %s227 = sand.u32 %s122, 1
          %s228 = smul.addr %s227, 32
          %s229 = scalar_lea.vmem [#allocation9], %s228
          %s230 = smul.u32 2, %s18
          %s232 = ssub.s32 512, 512
          %233 = vsyncadd %s226, %s232
          %s234 = smul.addr %s230, 128
          %s235 = scalar_lea.hbm %s4, %s234
          %s236 = sshll.u32 %s229, 4
          %s237 = int_to_ptr.vmem [resolvable:$true] %s236
          %242 = dma.hbm_to_vmem [thread:$0]  %s235, 512, %s237, %s226, 512, 256, 16
        $region36: #{tpu_custom_call.1} parent=23 // pred_fallthru
          _
      $region24: #{tpu_custom_call.1} parent=5 // pred_fallthru
        _
      %p243 = scmp.le.s32.totalorder 1, %s18
      %p244 = scmp.lt.s32.totalorder %s18, 3
      %p245 = pnand %p243, %p244
      %p246 = pneg %p245
      // Predicated region
      $region37: #{tpu_custom_call.1} parent=5 // pred_check
        _
      $region38: #{tpu_custom_call.1} parent=5 // pred_check_branch
        %248 = sbr.rel (%p245) target = $region40
      $region39: #{tpu_custom_call.1} parent=5 // pred_region
        %s249 = ssub.s32 %s18, 1
        %s250 = sand.u32 %s73, 1
        %s251 = scalar_lea.sflag [#allocation5], %s250
        %s252 = sand.u32 %s73, 1
        %s253 = smul.addr %s252, 16
        %s254 = scalar_lea.vmem [#allocation4], %s253
        // Predicated region
        $region41: #{tpu_custom_call.1} parent=39 // pred_check
          %p255 = pneg %p86
        $region42: #{tpu_custom_call.1} parent=39 // pred_check_branch
          %257 = sbr.rel (%p255) target = $region44
        $region43: #{tpu_custom_call.1} parent=39 // pred_region
          %258 = dma.done %s251, 256
        $region44: #{tpu_custom_call.1} parent=39 // pred_fallthru
          _
        %s259 = sand.u32 %s23, 1
        %s260 = scalar_lea.sflag [#allocation8], %s259
        %s261 = sand.u32 %s99, 1
        %s262 = smul.addr %s261, 16
        %s263 = scalar_lea.vmem [#allocation7], %s262
        // Predicated region
        $region45: #{tpu_custom_call.1} parent=39 // pred_check
          %p264 = pneg %p112
        $region46: #{tpu_custom_call.1} parent=39 // pred_check_branch
          %266 = sbr.rel (%p264) target = $region48
        $region47: #{tpu_custom_call.1} parent=39 // pred_region
          %267 = dma.done %s260, 256
        $region48: #{tpu_custom_call.1} parent=39 // pred_fallthru
          _
        %s268 = sand.u32 %s23, 1
        %s269 = scalar_lea.sflag [#allocation8], %s268
        %s270 = sand.u32 %s125, 1
        %s271 = smul.addr %s270, 32
        %s272 = scalar_lea.vmem [#allocation9], %s271
        // Predicated region
        $region49: #{tpu_custom_call.1} parent=39 // pred_check
          %p273 = pneg %p138
        $region50: #{tpu_custom_call.1} parent=39 // pred_check_branch
          %275 = sbr.rel (%p273) target = $region52
        $region51: #{tpu_custom_call.1} parent=39 // pred_region
          %276 = dma.done %s269, 512
        $region52: #{tpu_custom_call.1} parent=39 // pred_fallthru
          _
        %p277 = pneg %p39
        %p278 = pneg %p36
        %p279 = pneg %p60
        %p280 = pneg %p57
        %s281 = sand.u32 %s73, 1
        %s282 = scalar_lea.sflag [#allocation5], %s281
        %s283 = sand.u32 %s73, 1
        %s284 = smul.addr %s283, 16
        %s285 = scalar_lea.vmem [#allocation4], %s284
        %p286 = pneg %p86
        %p287 = pneg %p83
        %s288 = sand.u32 %s23, 1
        %s289 = scalar_lea.sflag [#allocation8], %s288
        %s290 = sand.u32 %s99, 1
        %s291 = smul.addr %s290, 16
        %s292 = scalar_lea.vmem [#allocation7], %s291
        %p293 = pneg %p112
        %p294 = pneg %p109
        %s295 = sand.u32 %s23, 1
        %s296 = scalar_lea.sflag [#allocation8], %s295
        %s297 = sand.u32 %s125, 1
        %s298 = smul.addr %s297, 32
        %s299 = scalar_lea.vmem [#allocation9], %s298
        %p300 = pneg %p138
        %p301 = pneg %p135
        %p302 = pneg %p159
        %p303 = pneg %p156
        %s304 = smul.u32 2, %s23
        %s305 = smul.u32 2, %s23
        %s306 = smul.u32 2, %s23
        %p307 = scmp.eq.s32.totalorder %s23, 0
        // Predicated region
        $region53: #{tpu_custom_call.1} parent=39 // pred_check
          %p308 = pneg %p307
        $region54: #{tpu_custom_call.1} parent=39 // pred_check_branch
          %310 = sbr.rel (%p308) target = $region56
        $region55: #{tpu_custom_call.1} parent=39 // pred_region
          %vm311 = vcmask 64512
          %312 = vst.msk [vmem:[#allocation2] sm:$0xff] %vm311, 0.0
          %vm313 = vcmask 7168
          %314 = vst.msk [vmem:[#allocation3] sm:$0xff] %vm313, 0.0
        $region56: #{tpu_custom_call.1} parent=39 // pred_fallthru
          _
        %v315 = vld [vmem:[%s0] sm:$0xff]
        %v316 = vld [vmem:[%s1] sm:$0x1]
        %317 = vset.pattern.permute.xlu0 0
        %318 = vperm.xlu0 %317, %v315
        %v319 = vpop.permute.xlu0 %318
        %v320 = vlaneseq
        %v321 = vshrl.u32 %v320, 7
        %v322 = vsub.s32 0, %v321
        %v323 = vrot.slane %v316, %v322
        %vm324 = vcmp.eq.s32.totalorder %v319, %v323
        %v325 = vsel %vm324, 1, 0
        %v326 = vcvt.s32.f32 %v325
        %vm327 = vcmask 64512
        %v328 = vsel %vm327, %v326, 0.0
        %329 = vadd.xlane.f32.xlu0 %v328
        %v330 = vpop.xlane.xlu0 %329
        %v331 = vlaneseq
        %v332 = vand.u32 %v331, 127
        %vm333 = vcmp.eq.s32.totalorder %v319, %v332
        %v334 = vsel %vm333, 1, 0
        %v335 = vcvt.s32.f32 %v334
        %v336 = vld [vmem:[%s254] sm:$0xff]
        %v337 = vld [vmem:[%s254 + $0x8] sm:$0xff]
        %v338 = vld [vmem:[%s263] sm:$0xff]
        %v339 = vld [vmem:[%s263 + $0x8] sm:$0xff]
        %v340 = vld [vmem:[%s272] sm:$0xff]
        %v341 = vld [vmem:[%s272 + $0x8] sm:$0xff]
        %v342 = vld [vmem:[%s272 + $0x10] sm:$0xff]
        %v343 = vld [vmem:[%s272 + $0x18] sm:$0xff]
        %vm344 = vcmask 130048
        %v346 = vsel %vm344, %v335, 0
        %v348 = vand.u32 %v341, 4294901760
        %349 = vmatprep.subr.mxu0 %v348
        %v350 = vand.u32 %v340, 4294901760
        %351 = vmatpush1.msra.mxu0 %v350
        %v352 = vand.u32 %v343, 4294901760
        %353 = vmatprep.subr.mxu0 %v352
        %v354 = vand.u32 %v342, 4294901760
        %355 = vmatpush1.msra.mxu0 %v354
        %356 = vmatprep.subr.mxu0 0.0
        %357 = vmatpush1.msra.mxu0 0.0
        %358 = vmatprep.subr.mxu0 0.0
        %359 = vmatpush1.msra.mxu0 0.0
        %360 = vmatprep.subr.mxu0 0.0
        %361 = vmatpush1.msra.mxu0 0.0
        %362 = vmatprep.subr.mxu0 0.0
        %363 = vmatpush1.msra.mxu0 0.0
        %364 = vmatprep.subr.mxu0 0.0
        %365 = vmatpush1.msra.mxu0 0.0
        %366 = vmatprep.subr.mxu0 0.0
        %367 = vmatpush1.msra.mxu0 0.0
        %368 = vmatprep.subr.mxu0 0.0
        %369 = vmatpush1.msra.mxu0 0.0
        %370 = vmatprep.subr.mxu0 0.0
        %371 = vmatpush1.msra.mxu0 0.0
        %372 = vmatprep.subr.mxu0 0.0
        %373 = vmatpush1.msra.mxu0 0.0
        %374 = vmatprep.subr.mxu0 0.0
        %375 = vmatpush1.msra.mxu0 0.0
        %376 = vmatprep.subr.mxu0 0.0
        %377 = vmatpush1.msra.mxu0 0.0
        %378 = vmatprep.subr.mxu0 0.0
        %379 = vmatpush1.msra.mxu0 0.0
        %380 = vmatprep.subr.mxu0 0.0
        %381 = vmatpush1.msra.mxu0 0.0
        %382 = vmatprep.subr.mxu0 0.0
        %383 = vmatpush1.msra.mxu0 0.0
        %384 = vmatprep.subr.mxu0 0.0
        %385 = vmatpush1.msra.mxu0 0.0
        %386 = vmatprep.subr.mxu0 0.0
        %387 = vmatpush1.msra.mxu0 0.0
        %388 = vmatprep.subr.mxu0 0.0
        %389 = vmatpush1.msra.mxu0 0.0
        %390 = vmatprep.subr.mxu0 0.0
        %391 = vmatpush1.msra.mxu0 0.0
        %392 = vmatprep.subr.mxu0 0.0
        %393 = vmatpush1.msra.mxu0 0.0
        %394 = vmatprep.subr.mxu0 0.0
        %395 = vmatpush1.msra.mxu0 0.0
        %396 = vmatprep.subr.mxu0 0.0
        %397 = vmatpush1.msra.mxu0 0.0
        %398 = vmatprep.subr.mxu0 0.0
        %399 = vmatpush1.msra.mxu0 0.0
        %400 = vmatprep.subr.mxu0 0.0
        %401 = vmatpush1.msra.mxu0 0.0
        %402 = vmatprep.subr.mxu0 0.0
        %403 = vmatpush1.msra.mxu0 0.0
        %404 = vmatprep.subr.mxu0 0.0
        %405 = vmatpush1.msra.mxu0 0.0
        %406 = vmatprep.subr.mxu0 0.0
        %407 = vmatpush1.msra.mxu0 0.0
        %408 = vmatprep.subr.mxu0 0.0
        %409 = vmatpush1.msra.mxu0 0.0
        %410 = vmatprep.subr.mxu0 0.0
        %411 = vmatpush1.msra.mxu0 0.0
        %412 = vmatprep.subr.mxu0 0.0
        %413 = vmatpush1.msra.mxu0 0.0
        %414 = vmatprep.subr.mxu0 0.0
        %415 = vmatpush1.msra.mxu0 0.0
        %416 = vmatprep.mubr.f32.mxu0 0.0
        %v417 = vand.u32 %v346, 4294901760
        %v418 = vsub.f32 %v346, %v417
        %v419 = vand.u32 %v418, 4294901760
        %v420 = vsub.f32 %v418, %v419
        %v421 = vand.u32 %v420, 4294901760
        %422 = vmatmul.mubr.f32.gmra.mrb[0].mxu0 %v421
        %v423 = vpop.f32.mrb[0].mxu0
        %v424 = vadd.f32 0.0, %v423
        %v425 = vpop.f32.mrb[0].mxu0
        %v426 = vadd.f32 0.0, %v425
        %427 = vdwg.mxu0
        %v428 = vand.u32 %v341, 4294901760
        %v429 = vsub.f32 %v341, %v428
        %v430 = vand.u32 %v429, 4294901760
        %v431 = vsub.f32 %v429, %v430
        %v432 = vand.u32 %v431, 4294901760
        %433 = vmatprep.subr.mxu0 %v432
        %v434 = vand.u32 %v340, 4294901760
        %v435 = vsub.f32 %v340, %v434
        %v436 = vand.u32 %v435, 4294901760
        %v437 = vsub.f32 %v435, %v436
        %v438 = vand.u32 %v437, 4294901760
        %439 = vmatpush1.msra.mxu0 %v438
        %v440 = vand.u32 %v343, 4294901760
        %v441 = vsub.f32 %v343, %v440
        %v442 = vand.u32 %v441, 4294901760
        %v443 = vsub.f32 %v441, %v442
        %v444 = vand.u32 %v443, 4294901760
        %445 = vmatprep.subr.mxu0 %v444
        %v446 = vand.u32 %v342, 4294901760
        %v447 = vsub.f32 %v342, %v446
        %v448 = vand.u32 %v447, 4294901760
        %v449 = vsub.f32 %v447, %v448
        %v450 = vand.u32 %v449, 4294901760
        %451 = vmatpush1.msra.mxu0 %v450
        %452 = vmatprep.subr.mxu0 0.0
        %453 = vmatpush1.msra.mxu0 0.0
        %454 = vmatprep.subr.mxu0 0.0
        %455 = vmatpush1.msra.mxu0 0.0
        %456 = vmatprep.subr.mxu0 0.0
        %457 = vmatpush1.msra.mxu0 0.0
        %458 = vmatprep.subr.mxu0 0.0
        %459 = vmatpush1.msra.mxu0 0.0
        %460 = vmatprep.subr.mxu0 0.0
        %461 = vmatpush1.msra.mxu0 0.0
        %462 = vmatprep.subr.mxu0 0.0
        %463 = vmatpush1.msra.mxu0 0.0
        %464 = vmatprep.subr.mxu0 0.0
        %465 = vmatpush1.msra.mxu0 0.0
        %466 = vmatprep.subr.mxu0 0.0
        %467 = vmatpush1.msra.mxu0 0.0
        %468 = vmatprep.subr.mxu0 0.0
        %469 = vmatpush1.msra.mxu0 0.0
        %470 = vmatprep.subr.mxu0 0.0
        %471 = vmatpush1.msra.mxu0 0.0
        %472 = vmatprep.subr.mxu0 0.0
        %473 = vmatpush1.msra.mxu0 0.0
        %474 = vmatprep.subr.mxu0 0.0
        %475 = vmatpush1.msra.mxu0 0.0
        %476 = vmatprep.subr.mxu0 0.0
        %477 = vmatpush1.msra.mxu0 0.0
        %478 = vmatprep.subr.mxu0 0.0
        %479 = vmatpush1.msra.mxu0 0.0
        %480 = vmatprep.subr.mxu0 0.0
        %481 = vmatpush1.msra.mxu0 0.0
        %482 = vmatprep.subr.mxu0 0.0
        %483 = vmatpush1.msra.mxu0 0.0
        %484 = vmatprep.subr.mxu0 0.0
        %485 = vmatpush1.msra.mxu0 0.0
        %486 = vmatprep.subr.mxu0 0.0
        %487 = vmatpush1.msra.mxu0 0.0
        %488 = vmatprep.subr.mxu0 0.0
        %489 = vmatpush1.msra.mxu0 0.0
        %490 = vmatprep.subr.mxu0 0.0
        %491 = vmatpush1.msra.mxu0 0.0
        %492 = vmatprep.subr.mxu0 0.0
        %493 = vmatpush1.msra.mxu0 0.0
        %494 = vmatprep.subr.mxu0 0.0
        %495 = vmatpush1.msra.mxu0 0.0
        %496 = vmatprep.subr.mxu0 0.0
        %497 = vmatpush1.msra.mxu0 0.0
        %498 = vmatprep.subr.mxu0 0.0
        %499 = vmatpush1.msra.mxu0 0.0
        %500 = vmatprep.subr.mxu0 0.0
        %501 = vmatpush1.msra.mxu0 0.0
        %502 = vmatprep.subr.mxu0 0.0
        %503 = vmatpush1.msra.mxu0 0.0
        %504 = vmatprep.subr.mxu0 0.0
        %505 = vmatpush1.msra.mxu0 0.0
        %506 = vmatprep.subr.mxu0 0.0
        %507 = vmatpush1.msra.mxu0 0.0
        %508 = vmatprep.subr.mxu0 0.0
        %509 = vmatpush1.msra.mxu0 0.0
        %510 = vmatprep.subr.mxu0 0.0
        %511 = vmatpush1.msra.mxu0 0.0
        %512 = vmatprep.mubr.f32.mxu0 0.0
        %v513 = vand.u32 %v346, 4294901760
        %514 = vmatmul.mubr.f32.gmra.mrb[0].mxu0 %v513
        %v515 = vpop.f32.mrb[0].mxu0
        %v516 = vadd.f32 %v424, %v515
        %v517 = vpop.f32.mrb[0].mxu0
        %v518 = vadd.f32 %v426, %v517
        %519 = vdwg.mxu0
        %v520 = vand.u32 %v341, 4294901760
        %v521 = vsub.f32 %v341, %v520
        %522 = vmatprep.subr.mxu0 %v521
        %v523 = vand.u32 %v340, 4294901760
        %v524 = vsub.f32 %v340, %v523
        %525 = vmatpush1.msra.mxu0 %v524
        %v526 = vand.u32 %v343, 4294901760
        %v527 = vsub.f32 %v343, %v526
        %528 = vmatprep.subr.mxu0 %v527
        %v529 = vand.u32 %v342, 4294901760
        %v530 = vsub.f32 %v342, %v529
        %531 = vmatpush1.msra.mxu0 %v530
        %532 = vmatprep.subr.mxu0 0.0
        %533 = vmatpush1.msra.mxu0 0.0
        %534 = vmatprep.subr.mxu0 0.0
        %535 = vmatpush1.msra.mxu0 0.0
        %536 = vmatprep.subr.mxu0 0.0
        %537 = vmatpush1.msra.mxu0 0.0
        %538 = vmatprep.subr.mxu0 0.0
        %539 = vmatpush1.msra.mxu0 0.0
        %540 = vmatprep.subr.mxu0 0.0
        %541 = vmatpush1.msra.mxu0 0.0
        %542 = vmatprep.subr.mxu0 0.0
        %543 = vmatpush1.msra.mxu0 0.0
        %544 = vmatprep.subr.mxu0 0.0
        %545 = vmatpush1.msra.mxu0 0.0
        %546 = vmatprep.subr.mxu0 0.0
        %547 = vmatpush1.msra.mxu0 0.0
        %548 = vmatprep.subr.mxu0 0.0
        %549 = vmatpush1.msra.mxu0 0.0
        %550 = vmatprep.subr.mxu0 0.0
        %551 = vmatpush1.msra.mxu0 0.0
        %552 = vmatprep.subr.mxu0 0.0
        %553 = vmatpush1.msra.mxu0 0.0
        %554 = vmatprep.subr.mxu0 0.0
        %555 = vmatpush1.msra.mxu0 0.0
        %556 = vmatprep.subr.mxu0 0.0
        %557 = vmatpush1.msra.mxu0 0.0
        %558 = vmatprep.subr.mxu0 0.0
        %559 = vmatpush1.msra.mxu0 0.0
        %560 = vmatprep.subr.mxu0 0.0
        %561 = vmatpush1.msra.mxu0 0.0
        %562 = vmatprep.subr.mxu0 0.0
        %563 = vmatpush1.msra.mxu0 0.0
        %564 = vmatprep.subr.mxu0 0.0
        %565 = vmatpush1.msra.mxu0 0.0
        %566 = vmatprep.subr.mxu0 0.0
        %567 = vmatpush1.msra.mxu0 0.0
        %568 = vmatprep.subr.mxu0 0.0
        %569 = vmatpush1.msra.mxu0 0.0
        %570 = vmatprep.subr.mxu0 0.0
        %571 = vmatpush1.msra.mxu0 0.0
        %572 = vmatprep.subr.mxu0 0.0
        %573 = vmatpush1.msra.mxu0 0.0
        %574 = vmatprep.subr.mxu0 0.0
        %575 = vmatpush1.msra.mxu0 0.0
        %576 = vmatprep.subr.mxu0 0.0
        %577 = vmatpush1.msra.mxu0 0.0
        %578 = vmatprep.subr.mxu0 0.0
        %579 = vmatpush1.msra.mxu0 0.0
        %580 = vmatprep.subr.mxu0 0.0
        %581 = vmatpush1.msra.mxu0 0.0
        %582 = vmatprep.subr.mxu0 0.0
        %583 = vmatpush1.msra.mxu0 0.0
        %584 = vmatprep.subr.mxu0 0.0
        %585 = vmatpush1.msra.mxu0 0.0
        %586 = vmatprep.subr.mxu0 0.0
        %587 = vmatpush1.msra.mxu0 0.0
        %588 = vmatprep.subr.mxu0 0.0
        %589 = vmatpush1.msra.mxu0 0.0
        %590 = vmatprep.subr.mxu0 0.0
        %591 = vmatpush1.msra.mxu0 0.0
        %592 = vmatprep.mubr.f32.mxu0 0.0
        %v593 = vand.u32 %v346, 4294901760
        %v594 = vsub.f32 %v346, %v593
        %595 = vmatmul.mubr.f32.gmra.mrb[0].mxu0 %v594
        %v596 = vpop.f32.mrb[0].mxu0
        %v597 = vadd.f32 %v516, %v596
        %v598 = vpop.f32.mrb[0].mxu0
        %v599 = vadd.f32 %v518, %v598
        %600 = vdwg.mxu0
        %v601 = vand.u32 %v341, 4294901760
        %602 = vmatprep.subr.mxu0 %v601
        %v603 = vand.u32 %v340, 4294901760
        %604 = vmatpush1.msra.mxu0 %v603
        %v605 = vand.u32 %v343, 4294901760
        %606 = vmatprep.subr.mxu0 %v605
        %v607 = vand.u32 %v342, 4294901760
        %608 = vmatpush1.msra.mxu0 %v607
        %609 = vmatprep.subr.mxu0 0.0
        %610 = vmatpush1.msra.mxu0 0.0
        %611 = vmatprep.subr.mxu0 0.0
        %612 = vmatpush1.msra.mxu0 0.0
        %613 = vmatprep.subr.mxu0 0.0
        %614 = vmatpush1.msra.mxu0 0.0
        %615 = vmatprep.subr.mxu0 0.0
        %616 = vmatpush1.msra.mxu0 0.0
        %617 = vmatprep.subr.mxu0 0.0
        %618 = vmatpush1.msra.mxu0 0.0
        %619 = vmatprep.subr.mxu0 0.0
        %620 = vmatpush1.msra.mxu0 0.0
        %621 = vmatprep.subr.mxu0 0.0
        %622 = vmatpush1.msra.mxu0 0.0
        %623 = vmatprep.subr.mxu0 0.0
        %624 = vmatpush1.msra.mxu0 0.0
        %625 = vmatprep.subr.mxu0 0.0
        %626 = vmatpush1.msra.mxu0 0.0
        %627 = vmatprep.subr.mxu0 0.0
        %628 = vmatpush1.msra.mxu0 0.0
        %629 = vmatprep.subr.mxu0 0.0
        %630 = vmatpush1.msra.mxu0 0.0
        %631 = vmatprep.subr.mxu0 0.0
        %632 = vmatpush1.msra.mxu0 0.0
        %633 = vmatprep.subr.mxu0 0.0
        %634 = vmatpush1.msra.mxu0 0.0
        %635 = vmatprep.subr.mxu0 0.0
        %636 = vmatpush1.msra.mxu0 0.0
        %637 = vmatprep.subr.mxu0 0.0
        %638 = vmatpush1.msra.mxu0 0.0
        %639 = vmatprep.subr.mxu0 0.0
        %640 = vmatpush1.msra.mxu0 0.0
        %641 = vmatprep.subr.mxu0 0.0
        %642 = vmatpush1.msra.mxu0 0.0
        %643 = vmatprep.subr.mxu0 0.0
        %644 = vmatpush1.msra.mxu0 0.0
        %645 = vmatprep.subr.mxu0 0.0
        %646 = vmatpush1.msra.mxu0 0.0
        %647 = vmatprep.subr.mxu0 0.0
        %648 = vmatpush1.msra.mxu0 0.0
        %649 = vmatprep.subr.mxu0 0.0
        %650 = vmatpush1.msra.mxu0 0.0
        %651 = vmatprep.subr.mxu0 0.0
        %652 = vmatpush1.msra.mxu0 0.0
        %653 = vmatprep.subr.mxu0 0.0
        %654 = vmatpush1.msra.mxu0 0.0
        %655 = vmatprep.subr.mxu0 0.0
        %656 = vmatpush1.msra.mxu0 0.0
        %657 = vmatprep.subr.mxu0 0.0
        %658 = vmatpush1.msra.mxu0 0.0
        %659 = vmatprep.subr.mxu0 0.0
        %660 = vmatpush1.msra.mxu0 0.0
        %661 = vmatprep.subr.mxu0 0.0
        %662 = vmatpush1.msra.mxu0 0.0
        %663 = vmatprep.subr.mxu0 0.0
        %664 = vmatpush1.msra.mxu0 0.0
        %665 = vmatprep.subr.mxu0 0.0
        %666 = vmatpush1.msra.mxu0 0.0
        %667 = vmatprep.subr.mxu0 0.0
        %668 = vmatpush1.msra.mxu0 0.0
        %669 = vmatprep.mubr.f32.mxu0 0.0
        %v670 = vand.u32 %v346, 4294901760
        %v671 = vsub.f32 %v346, %v670
        %v672 = vand.u32 %v671, 4294901760
        %673 = vmatmul.mubr.f32.gmra.mrb[0].mxu0 %v672
        %v674 = vpop.f32.mrb[0].mxu0
        %v675 = vadd.f32 %v597, %v674
        %v676 = vpop.f32.mrb[0].mxu0
        %v677 = vadd.f32 %v599, %v676
        %678 = vdwg.mxu0
        %v679 = vand.u32 %v341, 4294901760
        %v680 = vsub.f32 %v341, %v679
        %v681 = vand.u32 %v680, 4294901760
        %682 = vmatprep.subr.mxu0 %v681
        %v683 = vand.u32 %v340, 4294901760
        %v684 = vsub.f32 %v340, %v683
        %v685 = vand.u32 %v684, 4294901760
        %686 = vmatpush1.msra.mxu0 %v685
        %v687 = vand.u32 %v343, 4294901760
        %v688 = vsub.f32 %v343, %v687
        %v689 = vand.u32 %v688, 4294901760
        %690 = vmatprep.subr.mxu0 %v689
        %v691 = vand.u32 %v342, 4294901760
        %v692 = vsub.f32 %v342, %v691
        %v693 = vand.u32 %v692, 4294901760
        %694 = vmatpush1.msra.mxu0 %v693
        %695 = vmatprep.subr.mxu0 0.0
        %696 = vmatpush1.msra.mxu0 0.0
        %697 = vmatprep.subr.mxu0 0.0
        %698 = vmatpush1.msra.mxu0 0.0
        %699 = vmatprep.subr.mxu0 0.0
        %700 = vmatpush1.msra.mxu0 0.0
        %701 = vmatprep.subr.mxu0 0.0
        %702 = vmatpush1.msra.mxu0 0.0
        %703 = vmatprep.subr.mxu0 0.0
        %704 = vmatpush1.msra.mxu0 0.0
        %705 = vmatprep.subr.mxu0 0.0
        %706 = vmatpush1.msra.mxu0 0.0
        %707 = vmatprep.subr.mxu0 0.0
        %708 = vmatpush1.msra.mxu0 0.0
        %709 = vmatprep.subr.mxu0 0.0
        %710 = vmatpush1.msra.mxu0 0.0
        %711 = vmatprep.subr.mxu0 0.0
        %712 = vmatpush1.msra.mxu0 0.0
        %713 = vmatprep.subr.mxu0 0.0
        %714 = vmatpush1.msra.mxu0 0.0
        %715 = vmatprep.subr.mxu0 0.0
        %716 = vmatpush1.msra.mxu0 0.0
        %717 = vmatprep.subr.mxu0 0.0
        %718 = vmatpush1.msra.mxu0 0.0
        %719 = vmatprep.subr.mxu0 0.0
        %720 = vmatpush1.msra.mxu0 0.0
        %721 = vmatprep.subr.mxu0 0.0
        %722 = vmatpush1.msra.mxu0 0.0
        %723 = vmatprep.subr.mxu0 0.0
        %724 = vmatpush1.msra.mxu0 0.0
        %725 = vmatprep.subr.mxu0 0.0
        %726 = vmatpush1.msra.mxu0 0.0
        %727 = vmatprep.subr.mxu0 0.0
        %728 = vmatpush1.msra.mxu0 0.0
        %729 = vmatprep.subr.mxu0 0.0
        %730 = vmatpush1.msra.mxu0 0.0
        %731 = vmatprep.subr.mxu0 0.0
        %732 = vmatpush1.msra.mxu0 0.0
        %733 = vmatprep.subr.mxu0 0.0
        %734 = vmatpush1.msra.mxu0 0.0
        %735 = vmatprep.subr.mxu0 0.0
        %736 = vmatpush1.msra.mxu0 0.0
        %737 = vmatprep.subr.mxu0 0.0
        %738 = vmatpush1.msra.mxu0 0.0
        %739 = vmatprep.subr.mxu0 0.0
        %740 = vmatpush1.msra.mxu0 0.0
        %741 = vmatprep.subr.mxu0 0.0
        %742 = vmatpush1.msra.mxu0 0.0
        %743 = vmatprep.subr.mxu0 0.0
        %744 = vmatpush1.msra.mxu0 0.0
        %745 = vmatprep.subr.mxu0 0.0
        %746 = vmatpush1.msra.mxu0 0.0
        %747 = vmatprep.subr.mxu0 0.0
        %748 = vmatpush1.msra.mxu0 0.0
        %749 = vmatprep.subr.mxu0 0.0
        %750 = vmatpush1.msra.mxu0 0.0
        %751 = vmatprep.subr.mxu0 0.0
        %752 = vmatpush1.msra.mxu0 0.0
        %753 = vmatprep.subr.mxu0 0.0
        %754 = vmatpush1.msra.mxu0 0.0
        %755 = vmatprep.mubr.f32.mxu0 0.0
        %v756 = vand.u32 %v346, 4294901760
        %757 = vmatmul.mubr.f32.gmra.mrb[0].mxu0 %v756
        %v758 = vpop.f32.mrb[0].mxu0
        %v759 = vadd.f32 %v675, %v758
        %v760 = vpop.f32.mrb[0].mxu0
        %v761 = vadd.f32 %v677, %v760
        %762 = vdwg.mxu0
        %v763 = vand.u32 %v341, 4294901760
        %764 = vmatprep.subr.mxu0 %v763
        %v765 = vand.u32 %v340, 4294901760
        %766 = vmatpush1.msra.mxu0 %v765
        %v767 = vand.u32 %v343, 4294901760
        %768 = vmatprep.subr.mxu0 %v767
        %v769 = vand.u32 %v342, 4294901760
        %770 = vmatpush1.msra.mxu0 %v769
        %771 = vmatprep.subr.mxu0 0.0
        %772 = vmatpush1.msra.mxu0 0.0
        %773 = vmatprep.subr.mxu0 0.0
        %774 = vmatpush1.msra.mxu0 0.0
        %775 = vmatprep.subr.mxu0 0.0
        %776 = vmatpush1.msra.mxu0 0.0
        %777 = vmatprep.subr.mxu0 0.0
        %778 = vmatpush1.msra.mxu0 0.0
        %779 = vmatprep.subr.mxu0 0.0
        %780 = vmatpush1.msra.mxu0 0.0
        %781 = vmatprep.subr.mxu0 0.0
        %782 = vmatpush1.msra.mxu0 0.0
        %783 = vmatprep.subr.mxu0 0.0
        %784 = vmatpush1.msra.mxu0 0.0
        %785 = vmatprep.subr.mxu0 0.0
        %786 = vmatpush1.msra.mxu0 0.0
        %787 = vmatprep.subr.mxu0 0.0
        %788 = vmatpush1.msra.mxu0 0.0
        %789 = vmatprep.subr.mxu0 0.0
        %790 = vmatpush1.msra.mxu0 0.0
        %791 = vmatprep.subr.mxu0 0.0
        %792 = vmatpush1.msra.mxu0 0.0
        %793 = vmatprep.subr.mxu0 0.0
        %794 = vmatpush1.msra.mxu0 0.0
        %795 = vmatprep.subr.mxu0 0.0
        %796 = vmatpush1.msra.mxu0 0.0
        %797 = vmatprep.subr.mxu0 0.0
        %798 = vmatpush1.msra.mxu0 0.0
        %799 = vmatprep.subr.mxu0 0.0
        %800 = vmatpush1.msra.mxu0 0.0
        %801 = vmatprep.subr.mxu0 0.0
        %802 = vmatpush1.msra.mxu0 0.0
        %803 = vmatprep.subr.mxu0 0.0
        %804 = vmatpush1.msra.mxu0 0.0
        %805 = vmatprep.subr.mxu0 0.0
        %806 = vmatpush1.msra.mxu0 0.0
        %807 = vmatprep.subr.mxu0 0.0
        %808 = vmatpush1.msra.mxu0 0.0
        %809 = vmatprep.subr.mxu0 0.0
        %810 = vmatpush1.msra.mxu0 0.0
        %811 = vmatprep.subr.mxu0 0.0
        %812 = vmatpush1.msra.mxu0 0.0
        %813 = vmatprep.subr.mxu0 0.0
        %814 = vmatpush1.msra.mxu0 0.0
        %815 = vmatprep.subr.mxu0 0.0
        %816 = vmatpush1.msra.mxu0 0.0
        %817 = vmatprep.subr.mxu0 0.0
        %818 = vmatpush1.msra.mxu0 0.0
        %819 = vmatprep.subr.mxu0 0.0
        %820 = vmatpush1.msra.mxu0 0.0
        %821 = vmatprep.subr.mxu0 0.0
        %822 = vmatpush1.msra.mxu0 0.0
        %823 = vmatprep.subr.mxu0 0.0
        %824 = vmatpush1.msra.mxu0 0.0
        %825 = vmatprep.subr.mxu0 0.0
        %826 = vmatpush1.msra.mxu0 0.0
        %827 = vmatprep.subr.mxu0 0.0
        %828 = vmatpush1.msra.mxu0 0.0
        %829 = vmatprep.subr.mxu0 0.0
        %830 = vmatpush1.msra.mxu0 0.0
        %831 = vmatprep.mubr.f32.mxu0 0.0
        %v832 = vand.u32 %v346, 4294901760
        %833 = vmatmul.mubr.f32.gmra.mrb[0].mxu0 %v832
        %v834 = vpop.f32.mrb[0].mxu0
        %v835 = vadd.f32 %v759, %v834
        %v836 = vpop.f32.mrb[0].mxu0
        %v837 = vadd.f32 %v761, %v836
        %838 = vdwg.mxu0
        %v840 = vsel %vm327, %v326, 0
        %v842 = vand.u32 %v337, 4294901760
        %843 = vmatprep.subr.mxu0 %v842
        %v844 = vand.u32 %v336, 4294901760
        %845 = vmatpush1.msra.mxu0 %v844
        %846 = vmatprep.subr.mxu0 0.0
        %847 = vmatpush1.msra.mxu0 0.0
        %848 = vmatprep.subr.mxu0 0.0
        %849 = vmatpush1.msra.mxu0 0.0
        %850 = vmatprep.subr.mxu0 0.0
        %851 = vmatpush1.msra.mxu0 0.0
        %852 = vmatprep.subr.mxu0 0.0
        %853 = vmatpush1.msra.mxu0 0.0
        %854 = vmatprep.subr.mxu0 0.0
        %855 = vmatpush1.msra.mxu0 0.0
        %856 = vmatprep.subr.mxu0 0.0
        %857 = vmatpush1.msra.mxu0 0.0
        %858 = vmatprep.subr.mxu0 0.0
        %859 = vmatpush1.msra.mxu0 0.0
        %860 = vmatprep.subr.mxu0 0.0
        %861 = vmatpush1.msra.mxu0 0.0
        %862 = vmatprep.subr.mxu0 0.0
        %863 = vmatpush1.msra.mxu0 0.0
        %864 = vmatprep.subr.mxu0 0.0
        %865 = vmatpush1.msra.mxu0 0.0
        %866 = vmatprep.subr.mxu0 0.0
        %867 = vmatpush1.msra.mxu0 0.0
        %868 = vmatprep.subr.mxu0 0.0
        %869 = vmatpush1.msra.mxu0 0.0
        %870 = vmatprep.subr.mxu0 0.0
        %871 = vmatpush1.msra.mxu0 0.0
        %872 = vmatprep.subr.mxu0 0.0
        %873 = vmatpush1.msra.mxu0 0.0
        %874 = vmatprep.subr.mxu0 0.0
        %875 = vmatpush1.msra.mxu0 0.0
        %876 = vmatprep.subr.mxu0 0.0
        %877 = vmatpush1.msra.mxu0 0.0
        %878 = vmatprep.subr.mxu0 0.0
        %879 = vmatpush1.msra.mxu0 0.0
        %880 = vmatprep.subr.mxu0 0.0
        %881 = vmatpush1.msra.mxu0 0.0
        %882 = vmatprep.subr.mxu0 0.0
        %883 = vmatpush1.msra.mxu0 0.0
        %884 = vmatprep.subr.mxu0 0.0
        %885 = vmatpush1.msra.mxu0 0.0
        %886 = vmatprep.subr.mxu0 0.0
        %887 = vmatpush1.msra.mxu0 0.0
        %888 = vmatprep.subr.mxu0 0.0
        %889 = vmatpush1.msra.mxu0 0.0
        %890 = vmatprep.subr.mxu0 0.0
        %891 = vmatpush1.msra.mxu0 0.0
        %892 = vmatprep.subr.mxu0 0.0
        %893 = vmatpush1.msra.mxu0 0.0
        %894 = vmatprep.subr.mxu0 0.0
        %895 = vmatpush1.msra.mxu0 0.0
        %896 = vmatprep.subr.mxu0 0.0
        %897 = vmatpush1.msra.mxu0 0.0
        %898 = vmatprep.subr.mxu0 0.0
        %899 = vmatpush1.msra.mxu0 0.0
        %900 = vmatprep.subr.mxu0 0.0
        %901 = vmatpush1.msra.mxu0 0.0
        %902 = vmatprep.subr.mxu0 0.0
        %903 = vmatpush1.msra.mxu0 0.0
        %904 = vmatprep.subr.mxu0 0.0
        %905 = vmatpush1.msra.mxu0 0.0
        %906 = vmatprep.subr.mxu0 0.0
        %907 = vmatpush1.msra.mxu0 0.0
        %908 = vmatprep.mubr.f32.mxu0 0.0
        %v909 = vand.u32 %v840, 4294901760
        %v910 = vsub.f32 %v840, %v909
        %v911 = vand.u32 %v910, 4294901760
        %v912 = vsub.f32 %v910, %v911
        %v913 = vand.u32 %v912, 4294901760
        %914 = vmatmul.mubr.f32.gmra.mrb[0].mxu0 %v913
        %v915 = vpop.f32.mrb[0].mxu0
        %v916 = vadd.f32 0.0, %v915
        %v917 = vpop.f32.mrb[0].mxu0
        %v918 = vadd.f32 0.0, %v917
        %919 = vdwg.mxu0
        %v920 = vand.u32 %v337, 4294901760
        %v921 = vsub.f32 %v337, %v920
        %v922 = vand.u32 %v921, 4294901760
        %v923 = vsub.f32 %v921, %v922
        %v924 = vand.u32 %v923, 4294901760
        %925 = vmatprep.subr.mxu0 %v924
        %v926 = vand.u32 %v336, 4294901760
        %v927 = vsub.f32 %v336, %v926
        %v928 = vand.u32 %v927, 4294901760
        %v929 = vsub.f32 %v927, %v928
        %v930 = vand.u32 %v929, 4294901760
        %931 = vmatpush1.msra.mxu0 %v930
        %932 = vmatprep.subr.mxu0 0.0
        %933 = vmatpush1.msra.mxu0 0.0
        %934 = vmatprep.subr.mxu0 0.0
        %935 = vmatpush1.msra.mxu0 0.0
        %936 = vmatprep.subr.mxu0 0.0
        %937 = vmatpush1.msra.mxu0 0.0
        %938 = vmatprep.subr.mxu0 0.0
        %939 = vmatpush1.msra.mxu0 0.0
        %940 = vmatprep.subr.mxu0 0.0
        %941 = vmatpush1.msra.mxu0 0.0
        %942 = vmatprep.subr.mxu0 0.0
        %943 = vmatpush1.msra.mxu0 0.0
        %944 = vmatprep.subr.mxu0 0.0
        %945 = vmatpush1.msra.mxu0 0.0
        %946 = vmatprep.subr.mxu0 0.0
        %947 = vmatpush1.msra.mxu0 0.0
        %948 = vmatprep.subr.mxu0 0.0
        %949 = vmatpush1.msra.mxu0 0.0
        %950 = vmatprep.subr.mxu0 0.0
        %951 = vmatpush1.msra.mxu0 0.0
        %952 = vmatprep.subr.mxu0 0.0
        %953 = vmatpush1.msra.mxu0 0.0
        %954 = vmatprep.subr.mxu0 0.0
        %955 = vmatpush1.msra.mxu0 0.0
        %956 = vmatprep.subr.mxu0 0.0
        %957 = vmatpush1.msra.mxu0 0.0
        %958 = vmatprep.subr.mxu0 0.0
        %959 = vmatpush1.msra.mxu0 0.0
        %960 = vmatprep.subr.mxu0 0.0
        %961 = vmatpush1.msra.mxu0 0.0
        %962 = vmatprep.subr.mxu0 0.0
        %963 = vmatpush1.msra.mxu0 0.0
        %964 = vmatprep.subr.mxu0 0.0
        %965 = vmatpush1.msra.mxu0 0.0
        %966 = vmatprep.subr.mxu0 0.0
        %967 = vmatpush1.msra.mxu0 0.0
        %968 = vmatprep.subr.mxu0 0.0
        %969 = vmatpush1.msra.mxu0 0.0
        %970 = vmatprep.subr.mxu0 0.0
        %971 = vmatpush1.msra.mxu0 0.0
        %972 = vmatprep.subr.mxu0 0.0
        %973 = vmatpush1.msra.mxu0 0.0
        %974 = vmatprep.subr.mxu0 0.0
        %975 = vmatpush1.msra.mxu0 0.0
        %976 = vmatprep.subr.mxu0 0.0
        %977 = vmatpush1.msra.mxu0 0.0
        %978 = vmatprep.subr.mxu0 0.0
        %979 = vmatpush1.msra.mxu0 0.0
        %980 = vmatprep.subr.mxu0 0.0
        %981 = vmatpush1.msra.mxu0 0.0
        %982 = vmatprep.subr.mxu0 0.0
        %983 = vmatpush1.msra.mxu0 0.0
        %984 = vmatprep.subr.mxu0 0.0
        %985 = vmatpush1.msra.mxu0 0.0
        %986 = vmatprep.subr.mxu0 0.0
        %987 = vmatpush1.msra.mxu0 0.0
        %988 = vmatprep.subr.mxu0 0.0
        %989 = vmatpush1.msra.mxu0 0.0
        %990 = vmatprep.subr.mxu0 0.0
        %991 = vmatpush1.msra.mxu0 0.0
        %992 = vmatprep.subr.mxu0 0.0
        %993 = vmatpush1.msra.mxu0 0.0
        %994 = vmatprep.mubr.f32.mxu0 0.0
        %v995 = vand.u32 %v840, 4294901760
        %996 = vmatmul.mubr.f32.gmra.mrb[0].mxu0 %v995
        %v997 = vpop.f32.mrb[0].mxu0
        %v998 = vadd.f32 %v916, %v997
        %v999 = vpop.f32.mrb[0].mxu0
        %v1000 = vadd.f32 %v918, %v999
        %1001 = vdwg.mxu0
        %v1002 = vand.u32 %v337, 4294901760
        %v1003 = vsub.f32 %v337, %v1002
        %1004 = vmatprep.subr.mxu0 %v1003
        %v1005 = vand.u32 %v336, 4294901760
        %v1006 = vsub.f32 %v336, %v1005
        %1007 = vmatpush1.msra.mxu0 %v1006
        %1008 = vmatprep.subr.mxu0 0.0
        %1009 = vmatpush1.msra.mxu0 0.0
        %1010 = vmatprep.subr.mxu0 0.0
        %1011 = vmatpush1.msra.mxu0 0.0
        %1012 = vmatprep.subr.mxu0 0.0
        %1013 = vmatpush1.msra.mxu0 0.0
        %1014 = vmatprep.subr.mxu0 0.0
        %1015 = vmatpush1.msra.mxu0 0.0
        %1016 = vmatprep.subr.mxu0 0.0
        %1017 = vmatpush1.msra.mxu0 0.0
        %1018 = vmatprep.subr.mxu0 0.0
        %1019 = vmatpush1.msra.mxu0 0.0
        %1020 = vmatprep.subr.mxu0 0.0
        %1021 = vmatpush1.msra.mxu0 0.0
        %1022 = vmatprep.subr.mxu0 0.0
        %1023 = vmatpush1.msra.mxu0 0.0
        %1024 = vmatprep.subr.mxu0 0.0
        %1025 = vmatpush1.msra.mxu0 0.0
        %1026 = vmatprep.subr.mxu0 0.0
        %1027 = vmatpush1.msra.mxu0 0.0
        %1028 = vmatprep.subr.mxu0 0.0
        %1029 = vmatpush1.msra.mxu0 0.0
        %1030 = vmatprep.subr.mxu0 0.0
        %1031 = vmatpush1.msra.mxu0 0.0
        %1032 = vmatprep.subr.mxu0 0.0
        %1033 = vmatpush1.msra.mxu0 0.0
        %1034 = vmatprep.subr.mxu0 0.0
        %1035 = vmatpush1.msra.mxu0 0.0
        %1036 = vmatprep.subr.mxu0 0.0
        %1037 = vmatpush1.msra.mxu0 0.0
        %1038 = vmatprep.subr.mxu0 0.0
        %1039 = vmatpush1.msra.mxu0 0.0
        %1040 = vmatprep.subr.mxu0 0.0
        %1041 = vmatpush1.msra.mxu0 0.0
        %1042 = vmatprep.subr.mxu0 0.0
        %1043 = vmatpush1.msra.mxu0 0.0
        %1044 = vmatprep.subr.mxu0 0.0
        %1045 = vmatpush1.msra.mxu0 0.0
        %1046 = vmatprep.subr.mxu0 0.0
        %1047 = vmatpush1.msra.mxu0 0.0
        %1048 = vmatprep.subr.mxu0 0.0
        %1049 = vmatpush1.msra.mxu0 0.0
        %1050 = vmatprep.subr.mxu0 0.0
        %1051 = vmatpush1.msra.mxu0 0.0
        %1052 = vmatprep.subr.mxu0 0.0
        %1053 = vmatpush1.msra.mxu0 0.0
        %1054 = vmatprep.subr.mxu0 0.0
        %1055 = vmatpush1.msra.mxu0 0.0
        %1056 = vmatprep.subr.mxu0 0.0
        %1057 = vmatpush1.msra.mxu0 0.0
        %1058 = vmatprep.subr.mxu0 0.0
        %1059 = vmatpush1.msra.mxu0 0.0
        %1060 = vmatprep.subr.mxu0 0.0
        %1061 = vmatpush1.msra.mxu0 0.0
        %1062 = vmatprep.subr.mxu0 0.0
        %1063 = vmatpush1.msra.mxu0 0.0
        %1064 = vmatprep.subr.mxu0 0.0
        %1065 = vmatpush1.msra.mxu0 0.0
        %1066 = vmatprep.subr.mxu0 0.0
        %1067 = vmatpush1.msra.mxu0 0.0
        %1068 = vmatprep.subr.mxu0 0.0
        %1069 = vmatpush1.msra.mxu0 0.0
        %1070 = vmatprep.mubr.f32.mxu0 0.0
        %v1071 = vand.u32 %v840, 4294901760
        %v1072 = vsub.f32 %v840, %v1071
        %1073 = vmatmul.mubr.f32.gmra.mrb[0].mxu0 %v1072
        %v1074 = vpop.f32.mrb[0].mxu0
        %v1075 = vadd.f32 %v998, %v1074
        %v1076 = vpop.f32.mrb[0].mxu0
        %v1077 = vadd.f32 %v1000, %v1076
        %1078 = vdwg.mxu0
        %v1079 = vand.u32 %v337, 4294901760
        %1080 = vmatprep.subr.mxu0 %v1079
        %v1081 = vand.u32 %v336, 4294901760
        %1082 = vmatpush1.msra.mxu0 %v1081
        %1083 = vmatprep.subr.mxu0 0.0
        %1084 = vmatpush1.msra.mxu0 0.0
        %1085 = vmatprep.subr.mxu0 0.0
        %1086 = vmatpush1.msra.mxu0 0.0
        %1087 = vmatprep.subr.mxu0 0.0
        %1088 = vmatpush1.msra.mxu0 0.0
        %1089 = vmatprep.subr.mxu0 0.0
        %1090 = vmatpush1.msra.mxu0 0.0
        %1091 = vmatprep.subr.mxu0 0.0
        %1092 = vmatpush1.msra.mxu0 0.0
        %1093 = vmatprep.subr.mxu0 0.0
        %1094 = vmatpush1.msra.mxu0 0.0
        %1095 = vmatprep.subr.mxu0 0.0
        %1096 = vmatpush1.msra.mxu0 0.0
        %1097 = vmatprep.subr.mxu0 0.0
        %1098 = vmatpush1.msra.mxu0 0.0
        %1099 = vmatprep.subr.mxu0 0.0
        %1100 = vmatpush1.msra.mxu0 0.0
        %1101 = vmatprep.subr.mxu0 0.0
        %1102 = vmatpush1.msra.mxu0 0.0
        %1103 = vmatprep.subr.mxu0 0.0
        %1104 = vmatpush1.msra.mxu0 0.0
        %1105 = vmatprep.subr.mxu0 0.0
        %1106 = vmatpush1.msra.mxu0 0.0
        %1107 = vmatprep.subr.mxu0 0.0
        %1108 = vmatpush1.msra.mxu0 0.0
        %1109 = vmatprep.subr.mxu0 0.0
        %1110 = vmatpush1.msra.mxu0 0.0
        %1111 = vmatprep.subr.mxu0 0.0
        %1112 = vmatpush1.msra.mxu0 0.0
        %1113 = vmatprep.subr.mxu0 0.0
        %1114 = vmatpush1.msra.mxu0 0.0
        %1115 = vmatprep.subr.mxu0 0.0
        %1116 = vmatpush1.msra.mxu0 0.0
        %1117 = vmatprep.subr.mxu0 0.0
        %1118 = vmatpush1.msra.mxu0 0.0
        %1119 = vmatprep.subr.mxu0 0.0
        %1120 = vmatpush1.msra.mxu0 0.0
        %1121 = vmatprep.subr.mxu0 0.0
        %1122 = vmatpush1.msra.mxu0 0.0
        %1123 = vmatprep.subr.mxu0 0.0
        %1124 = vmatpush1.msra.mxu0 0.0
        %1125 = vmatprep.subr.mxu0 0.0
        %1126 = vmatpush1.msra.mxu0 0.0
        %1127 = vmatprep.subr.mxu0 0.0
        %1128 = vmatpush1.msra.mxu0 0.0
        %1129 = vmatprep.subr.mxu0 0.0
        %1130 = vmatpush1.msra.mxu0 0.0
        %1131 = vmatprep.subr.mxu0 0.0
        %1132 = vmatpush1.msra.mxu0 0.0
        %1133 = vmatprep.subr.mxu0 0.0
        %1134 = vmatpush1.msra.mxu0 0.0
        %1135 = vmatprep.subr.mxu0 0.0
        %1136 = vmatpush1.msra.mxu0 0.0
        %1137 = vmatprep.subr.mxu0 0.0
        %1138 = vmatpush1.msra.mxu0 0.0
        %1139 = vmatprep.subr.mxu0 0.0
        %1140 = vmatpush1.msra.mxu0 0.0
        %1141 = vmatprep.subr.mxu0 0.0
        %1142 = vmatpush1.msra.mxu0 0.0
        %1143 = vmatprep.subr.mxu0 0.0
        %1144 = vmatpush1.msra.mxu0 0.0
        %1145 = vmatprep.mubr.f32.mxu0 0.0
        %v1146 = vand.u32 %v840, 4294901760
        %v1147 = vsub.f32 %v840, %v1146
        %v1148 = vand.u32 %v1147, 4294901760
        %1149 = vmatmul.mubr.f32.gmra.mrb[0].mxu0 %v1148
        %v1150 = vpop.f32.mrb[0].mxu0
        %v1151 = vadd.f32 %v1075, %v1150
        %v1152 = vpop.f32.mrb[0].mxu0
        %v1153 = vadd.f32 %v1077, %v1152
        %1154 = vdwg.mxu0
        %v1155 = vand.u32 %v337, 4294901760
        %v1156 = vsub.f32 %v337, %v1155
        %v1157 = vand.u32 %v1156, 4294901760
        %1158 = vmatprep.subr.mxu0 %v1157
        %v1159 = vand.u32 %v336, 4294901760
        %v1160 = vsub.f32 %v336, %v1159
        %v1161 = vand.u32 %v1160, 4294901760
        %1162 = vmatpush1.msra.mxu0 %v1161
        %1163 = vmatprep.subr.mxu0 0.0
        %1164 = vmatpush1.msra.mxu0 0.0
        %1165 = vmatprep.subr.mxu0 0.0
        %1166 = vmatpush1.msra.mxu0 0.0
        %1167 = vmatprep.subr.mxu0 0.0
        %1168 = vmatpush1.msra.mxu0 0.0
        %1169 = vmatprep.subr.mxu0 0.0
        %1170 = vmatpush1.msra.mxu0 0.0
        %1171 = vmatprep.subr.mxu0 0.0
        %1172 = vmatpush1.msra.mxu0 0.0
        %1173 = vmatprep.subr.mxu0 0.0
        %1174 = vmatpush1.msra.mxu0 0.0
        %1175 = vmatprep.subr.mxu0 0.0
        %1176 = vmatpush1.msra.mxu0 0.0
        %1177 = vmatprep.subr.mxu0 0.0
        %1178 = vmatpush1.msra.mxu0 0.0
        %1179 = vmatprep.subr.mxu0 0.0
        %1180 = vmatpush1.msra.mxu0 0.0
        %1181 = vmatprep.subr.mxu0 0.0
        %1182 = vmatpush1.msra.mxu0 0.0
        %1183 = vmatprep.subr.mxu0 0.0
        %1184 = vmatpush1.msra.mxu0 0.0
        %1185 = vmatprep.subr.mxu0 0.0
        %1186 = vmatpush1.msra.mxu0 0.0
        %1187 = vmatprep.subr.mxu0 0.0
        %1188 = vmatpush1.msra.mxu0 0.0
        %1189 = vmatprep.subr.mxu0 0.0
        %1190 = vmatpush1.msra.mxu0 0.0
        %1191 = vmatprep.subr.mxu0 0.0
        %1192 = vmatpush1.msra.mxu0 0.0
        %1193 = vmatprep.subr.mxu0 0.0
        %1194 = vmatpush1.msra.mxu0 0.0
        %1195 = vmatprep.subr.mxu0 0.0
        %1196 = vmatpush1.msra.mxu0 0.0
        %1197 = vmatprep.subr.mxu0 0.0
        %1198 = vmatpush1.msra.mxu0 0.0
        %1199 = vmatprep.subr.mxu0 0.0
        %1200 = vmatpush1.msra.mxu0 0.0
        %1201 = vmatprep.subr.mxu0 0.0
        %1202 = vmatpush1.msra.mxu0 0.0
        %1203 = vmatprep.subr.mxu0 0.0
        %1204 = vmatpush1.msra.mxu0 0.0
        %1205 = vmatprep.subr.mxu0 0.0
        %1206 = vmatpush1.msra.mxu0 0.0
        %1207 = vmatprep.subr.mxu0 0.0
        %1208 = vmatpush1.msra.mxu0 0.0
        %1209 = vmatprep.subr.mxu0 0.0
        %1210 = vmatpush1.msra.mxu0 0.0
        %1211 = vmatprep.subr.mxu0 0.0
        %1212 = vmatpush1.msra.mxu0 0.0
        %1213 = vmatprep.subr.mxu0 0.0
        %1214 = vmatpush1.msra.mxu0 0.0
        %1215 = vmatprep.subr.mxu0 0.0
        %1216 = vmatpush1.msra.mxu0 0.0
        %1217 = vmatprep.subr.mxu0 0.0
        %1218 = vmatpush1.msra.mxu0 0.0
        %1219 = vmatprep.subr.mxu0 0.0
        %1220 = vmatpush1.msra.mxu0 0.0
        %1221 = vmatprep.subr.mxu0 0.0
        %1222 = vmatpush1.msra.mxu0 0.0
        %1223 = vmatprep.subr.mxu0 0.0
        %1224 = vmatpush1.msra.mxu0 0.0
        %1225 = vmatprep.mubr.f32.mxu0 0.0
        %v1226 = vand.u32 %v840, 4294901760
        %1227 = vmatmul.mubr.f32.gmra.mrb[0].mxu0 %v1226
        %v1228 = vpop.f32.mrb[0].mxu0
        %v1229 = vadd.f32 %v1151, %v1228
        %v1230 = vpop.f32.mrb[0].mxu0
        %v1231 = vadd.f32 %v1153, %v1230
        %1232 = vdwg.mxu0
        %v1233 = vand.u32 %v337, 4294901760
        %1234 = vmatprep.subr.mxu0 %v1233
        %v1235 = vand.u32 %v336, 4294901760
        %1236 = vmatpush1.msra.mxu0 %v1235
        %1237 = vmatprep.subr.mxu0 0.0
        %1238 = vmatpush1.msra.mxu0 0.0
        %1239 = vmatprep.subr.mxu0 0.0
        %1240 = vmatpush1.msra.mxu0 0.0
        %1241 = vmatprep.subr.mxu0 0.0
        %1242 = vmatpush1.msra.mxu0 0.0
        %1243 = vmatprep.subr.mxu0 0.0
        %1244 = vmatpush1.msra.mxu0 0.0
        %1245 = vmatprep.subr.mxu0 0.0
        %1246 = vmatpush1.msra.mxu0 0.0
        %1247 = vmatprep.subr.mxu0 0.0
        %1248 = vmatpush1.msra.mxu0 0.0
        %1249 = vmatprep.subr.mxu0 0.0
        %1250 = vmatpush1.msra.mxu0 0.0
        %1251 = vmatprep.subr.mxu0 0.0
        %1252 = vmatpush1.msra.mxu0 0.0
        %1253 = vmatprep.subr.mxu0 0.0
        %1254 = vmatpush1.msra.mxu0 0.0
        %1255 = vmatprep.subr.mxu0 0.0
        %1256 = vmatpush1.msra.mxu0 0.0
        %1257 = vmatprep.subr.mxu0 0.0
        %1258 = vmatpush1.msra.mxu0 0.0
        %1259 = vmatprep.subr.mxu0 0.0
        %1260 = vmatpush1.msra.mxu0 0.0
        %1261 = vmatprep.subr.mxu0 0.0
        %1262 = vmatpush1.msra.mxu0 0.0
        %1263 = vmatprep.subr.mxu0 0.0
        %1264 = vmatpush1.msra.mxu0 0.0
        %1265 = vmatprep.subr.mxu0 0.0
        %1266 = vmatpush1.msra.mxu0 0.0
        %1267 = vmatprep.subr.mxu0 0.0
        %1268 = vmatpush1.msra.mxu0 0.0
        %1269 = vmatprep.subr.mxu0 0.0
        %1270 = vmatpush1.msra.mxu0 0.0
        %1271 = vmatprep.subr.mxu0 0.0
        %1272 = vmatpush1.msra.mxu0 0.0
        %1273 = vmatprep.subr.mxu0 0.0
        %1274 = vmatpush1.msra.mxu0 0.0
        %1275 = vmatprep.subr.mxu0 0.0
        %1276 = vmatpush1.msra.mxu0 0.0
        %1277 = vmatprep.subr.mxu0 0.0
        %1278 = vmatpush1.msra.mxu0 0.0
        %1279 = vmatprep.subr.mxu0 0.0
        %1280 = vmatpush1.msra.mxu0 0.0
        %1281 = vmatprep.subr.mxu0 0.0
        %1282 = vmatpush1.msra.mxu0 0.0
        %1283 = vmatprep.subr.mxu0 0.0
        %1284 = vmatpush1.msra.mxu0 0.0
        %1285 = vmatprep.subr.mxu0 0.0
        %1286 = vmatpush1.msra.mxu0 0.0
        %1287 = vmatprep.subr.mxu0 0.0
        %1288 = vmatpush1.msra.mxu0 0.0
        %1289 = vmatprep.subr.mxu0 0.0
        %1290 = vmatpush1.msra.mxu0 0.0
        %1291 = vmatprep.subr.mxu0 0.0
        %1292 = vmatpush1.msra.mxu0 0.0
        %1293 = vmatprep.subr.mxu0 0.0
        %1294 = vmatpush1.msra.mxu0 0.0
        %1295 = vmatprep.subr.mxu0 0.0
        %1296 = vmatpush1.msra.mxu0 0.0
        %1297 = vmatprep.subr.mxu0 0.0
        %1298 = vmatpush1.msra.mxu0 0.0
        %1299 = vmatprep.mubr.f32.mxu0 0.0
        %v1300 = vand.u32 %v840, 4294901760
        %1301 = vmatmul.mubr.f32.gmra.mrb[0].mxu0 %v1300
        %v1302 = vpop.f32.mrb[0].mxu0
        %v1303 = vadd.f32 %v1229, %v1302
        %v1304 = vpop.f32.mrb[0].mxu0
        %v1305 = vadd.f32 %v1231, %v1304
        %1306 = vdwg.mxu0
        %v1307 = vrcp.pop %v330
        %v1308 = vmul.f32 %v1303, %v1307
        %v1309 = vmul.f32 %v1305, %v1307
        %v1310 = vand.u32 %v339, 4294901760
        %1311 = vmatprep.subr.mxu0 %v1310
        %v1312 = vand.u32 %v338, 4294901760
        %1313 = vmatpush1.msra.mxu0 %v1312
        %1314 = vmatprep.subr.mxu0 0.0
        %1315 = vmatpush1.msra.mxu0 0.0
        %1316 = vmatprep.subr.mxu0 0.0
        %1317 = vmatpush1.msra.mxu0 0.0
        %1318 = vmatprep.subr.mxu0 0.0
        %1319 = vmatpush1.msra.mxu0 0.0
        %1320 = vmatprep.subr.mxu0 0.0
        %1321 = vmatpush1.msra.mxu0 0.0
        %1322 = vmatprep.subr.mxu0 0.0
        %1323 = vmatpush1.msra.mxu0 0.0
        %1324 = vmatprep.subr.mxu0 0.0
        %1325 = vmatpush1.msra.mxu0 0.0
        %1326 = vmatprep.subr.mxu0 0.0
        %1327 = vmatpush1.msra.mxu0 0.0
        %1328 = vmatprep.subr.mxu0 0.0
        %1329 = vmatpush1.msra.mxu0 0.0
        %1330 = vmatprep.subr.mxu0 0.0
        %1331 = vmatpush1.msra.mxu0 0.0
        %1332 = vmatprep.subr.mxu0 0.0
        %1333 = vmatpush1.msra.mxu0 0.0
        %1334 = vmatprep.subr.mxu0 0.0
        %1335 = vmatpush1.msra.mxu0 0.0
        %1336 = vmatprep.subr.mxu0 0.0
        %1337 = vmatpush1.msra.mxu0 0.0
        %1338 = vmatprep.subr.mxu0 0.0
        %1339 = vmatpush1.msra.mxu0 0.0
        %1340 = vmatprep.subr.mxu0 0.0
        %1341 = vmatpush1.msra.mxu0 0.0
        %1342 = vmatprep.subr.mxu0 0.0
        %1343 = vmatpush1.msra.mxu0 0.0
        %1344 = vmatprep.subr.mxu0 0.0
        %1345 = vmatpush1.msra.mxu0 0.0
        %1346 = vmatprep.subr.mxu0 0.0
        %1347 = vmatpush1.msra.mxu0 0.0
        %1348 = vmatprep.subr.mxu0 0.0
        %1349 = vmatpush1.msra.mxu0 0.0
        %1350 = vmatprep.subr.mxu0 0.0
        %1351 = vmatpush1.msra.mxu0 0.0
        %1352 = vmatprep.subr.mxu0 0.0
        %1353 = vmatpush1.msra.mxu0 0.0
        %1354 = vmatprep.subr.mxu0 0.0
        %1355 = vmatpush1.msra.mxu0 0.0
        %1356 = vmatprep.subr.mxu0 0.0
        %1357 = vmatpush1.msra.mxu0 0.0
        %1358 = vmatprep.subr.mxu0 0.0
        %1359 = vmatpush1.msra.mxu0 0.0
        %1360 = vmatprep.subr.mxu0 0.0
        %1361 = vmatpush1.msra.mxu0 0.0
        %1362 = vmatprep.subr.mxu0 0.0
        %1363 = vmatpush1.msra.mxu0 0.0
        %1364 = vmatprep.subr.mxu0 0.0
        %1365 = vmatpush1.msra.mxu0 0.0
        %1366 = vmatprep.subr.mxu0 0.0
        %1367 = vmatpush1.msra.mxu0 0.0
        %1368 = vmatprep.subr.mxu0 0.0
        %1369 = vmatpush1.msra.mxu0 0.0
        %1370 = vmatprep.subr.mxu0 0.0
        %1371 = vmatpush1.msra.mxu0 0.0
        %1372 = vmatprep.subr.mxu0 0.0
        %1373 = vmatpush1.msra.mxu0 0.0
        %1374 = vmatprep.subr.mxu0 0.0
        %1375 = vmatpush1.msra.mxu0 0.0
        %1376 = vmatprep.mubr.f32.mxu0 0.0
        %v1377 = vand.u32 %v840, 4294901760
        %v1378 = vsub.f32 %v840, %v1377
        %v1379 = vand.u32 %v1378, 4294901760
        %v1380 = vsub.f32 %v1378, %v1379
        %v1381 = vand.u32 %v1380, 4294901760
        %1382 = vmatmul.mubr.f32.gmra.mrb[0].mxu0 %v1381
        %v1383 = vpop.f32.mrb[0].mxu0
        %v1384 = vadd.f32 0.0, %v1383
        %v1385 = vpop.f32.mrb[0].mxu0
        %v1386 = vadd.f32 0.0, %v1385
        %1387 = vdwg.mxu0
        %v1388 = vand.u32 %v339, 4294901760
        %v1389 = vsub.f32 %v339, %v1388
        %v1390 = vand.u32 %v1389, 4294901760
        %v1391 = vsub.f32 %v1389, %v1390
        %v1392 = vand.u32 %v1391, 4294901760
        %1393 = vmatprep.subr.mxu0 %v1392
        %v1394 = vand.u32 %v338, 4294901760
        %v1395 = vsub.f32 %v338, %v1394
        %v1396 = vand.u32 %v1395, 4294901760
        %v1397 = vsub.f32 %v1395, %v1396
        %v1398 = vand.u32 %v1397, 4294901760
        %1399 = vmatpush1.msra.mxu0 %v1398
        %1400 = vmatprep.subr.mxu0 0.0
        %1401 = vmatpush1.msra.mxu0 0.0
        %1402 = vmatprep.subr.mxu0 0.0
        %1403 = vmatpush1.msra.mxu0 0.0
        %1404 = vmatprep.subr.mxu0 0.0
        %1405 = vmatpush1.msra.mxu0 0.0
        %1406 = vmatprep.subr.mxu0 0.0
        %1407 = vmatpush1.msra.mxu0 0.0
        %1408 = vmatprep.subr.mxu0 0.0
        %1409 = vmatpush1.msra.mxu0 0.0
        %1410 = vmatprep.subr.mxu0 0.0
        %1411 = vmatpush1.msra.mxu0 0.0
        %1412 = vmatprep.subr.mxu0 0.0
        %1413 = vmatpush1.msra.mxu0 0.0
        %1414 = vmatprep.subr.mxu0 0.0
        %1415 = vmatpush1.msra.mxu0 0.0
        %1416 = vmatprep.subr.mxu0 0.0
        %1417 = vmatpush1.msra.mxu0 0.0
        %1418 = vmatprep.subr.mxu0 0.0
        %1419 = vmatpush1.msra.mxu0 0.0
        %1420 = vmatprep.subr.mxu0 0.0
        %1421 = vmatpush1.msra.mxu0 0.0
        %1422 = vmatprep.subr.mxu0 0.0
        %1423 = vmatpush1.msra.mxu0 0.0
        %1424 = vmatprep.subr.mxu0 0.0
        %1425 = vmatpush1.msra.mxu0 0.0
        %1426 = vmatprep.subr.mxu0 0.0
        %1427 = vmatpush1.msra.mxu0 0.0
        %1428 = vmatprep.subr.mxu0 0.0
        %1429 = vmatpush1.msra.mxu0 0.0
        %1430 = vmatprep.subr.mxu0 0.0
        %1431 = vmatpush1.msra.mxu0 0.0
        %1432 = vmatprep.subr.mxu0 0.0
        %1433 = vmatpush1.msra.mxu0 0.0
        %1434 = vmatprep.subr.mxu0 0.0
        %1435 = vmatpush1.msra.mxu0 0.0
        %1436 = vmatprep.subr.mxu0 0.0
        %1437 = vmatpush1.msra.mxu0 0.0
        %1438 = vmatprep.subr.mxu0 0.0
        %1439 = vmatpush1.msra.mxu0 0.0
        %1440 = vmatprep.subr.mxu0 0.0
        %1441 = vmatpush1.msra.mxu0 0.0
        %1442 = vmatprep.subr.mxu0 0.0
        %1443 = vmatpush1.msra.mxu0 0.0
        %1444 = vmatprep.subr.mxu0 0.0
        %1445 = vmatpush1.msra.mxu0 0.0
        %1446 = vmatprep.subr.mxu0 0.0
        %1447 = vmatpush1.msra.mxu0 0.0
        %1448 = vmatprep.subr.mxu0 0.0
        %1449 = vmatpush1.msra.mxu0 0.0
        %1450 = vmatprep.subr.mxu0 0.0
        %1451 = vmatpush1.msra.mxu0 0.0
        %1452 = vmatprep.subr.mxu0 0.0
        %1453 = vmatpush1.msra.mxu0 0.0
        %1454 = vmatprep.subr.mxu0 0.0
        %1455 = vmatpush1.msra.mxu0 0.0
        %1456 = vmatprep.subr.mxu0 0.0
        %1457 = vmatpush1.msra.mxu0 0.0
        %1458 = vmatprep.subr.mxu0 0.0
        %1459 = vmatpush1.msra.mxu0 0.0
        %1460 = vmatprep.subr.mxu0 0.0
        %1461 = vmatpush1.msra.mxu0 0.0
        %1462 = vmatprep.mubr.f32.mxu0 0.0
        %v1463 = vand.u32 %v840, 4294901760
        %1464 = vmatmul.mubr.f32.gmra.mrb[0].mxu0 %v1463
        %v1465 = vpop.f32.mrb[0].mxu0
        %v1466 = vadd.f32 %v1384, %v1465
        %v1467 = vpop.f32.mrb[0].mxu0
        %v1468 = vadd.f32 %v1386, %v1467
        %1469 = vdwg.mxu0
        %v1470 = vand.u32 %v339, 4294901760
        %v1471 = vsub.f32 %v339, %v1470
        %1472 = vmatprep.subr.mxu0 %v1471
        %v1473 = vand.u32 %v338, 4294901760
        %v1474 = vsub.f32 %v338, %v1473
        %1475 = vmatpush1.msra.mxu0 %v1474
        %1476 = vmatprep.subr.mxu0 0.0
        %1477 = vmatpush1.msra.mxu0 0.0
        %1478 = vmatprep.subr.mxu0 0.0
        %1479 = vmatpush1.msra.mxu0 0.0
        %1480 = vmatprep.subr.mxu0 0.0
        %1481 = vmatpush1.msra.mxu0 0.0
        %1482 = vmatprep.subr.mxu0 0.0
        %1483 = vmatpush1.msra.mxu0 0.0
        %1484 = vmatprep.subr.mxu0 0.0
        %1485 = vmatpush1.msra.mxu0 0.0
        %1486 = vmatprep.subr.mxu0 0.0
        %1487 = vmatpush1.msra.mxu0 0.0
        %1488 = vmatprep.subr.mxu0 0.0
        %1489 = vmatpush1.msra.mxu0 0.0
        %1490 = vmatprep.subr.mxu0 0.0
        %1491 = vmatpush1.msra.mxu0 0.0
        %1492 = vmatprep.subr.mxu0 0.0
        %1493 = vmatpush1.msra.mxu0 0.0
        %1494 = vmatprep.subr.mxu0 0.0
        %1495 = vmatpush1.msra.mxu0 0.0
        %1496 = vmatprep.subr.mxu0 0.0
        %1497 = vmatpush1.msra.mxu0 0.0
        %1498 = vmatprep.subr.mxu0 0.0
        %1499 = vmatpush1.msra.mxu0 0.0
        %1500 = vmatprep.subr.mxu0 0.0
        %1501 = vmatpush1.msra.mxu0 0.0
        %1502 = vmatprep.subr.mxu0 0.0
        %1503 = vmatpush1.msra.mxu0 0.0
        %1504 = vmatprep.subr.mxu0 0.0
        %1505 = vmatpush1.msra.mxu0 0.0
        %1506 = vmatprep.subr.mxu0 0.0
        %1507 = vmatpush1.msra.mxu0 0.0
        %1508 = vmatprep.subr.mxu0 0.0
        %1509 = vmatpush1.msra.mxu0 0.0
        %1510 = vmatprep.subr.mxu0 0.0
        %1511 = vmatpush1.msra.mxu0 0.0
        %1512 = vmatprep.subr.mxu0 0.0
        %1513 = vmatpush1.msra.mxu0 0.0
        %1514 = vmatprep.subr.mxu0 0.0
        %1515 = vmatpush1.msra.mxu0 0.0
        %1516 = vmatprep.subr.mxu0 0.0
        %1517 = vmatpush1.msra.mxu0 0.0
        %1518 = vmatprep.subr.mxu0 0.0
        %1519 = vmatpush1.msra.mxu0 0.0
        %1520 = vmatprep.subr.mxu0 0.0
        %1521 = vmatpush1.msra.mxu0 0.0
        %1522 = vmatprep.subr.mxu0 0.0
        %1523 = vmatpush1.msra.mxu0 0.0
        %1524 = vmatprep.subr.mxu0 0.0
        %1525 = vmatpush1.msra.mxu0 0.0
        %1526 = vmatprep.subr.mxu0 0.0
        %1527 = vmatpush1.msra.mxu0 0.0
        %1528 = vmatprep.subr.mxu0 0.0
        %1529 = vmatpush1.msra.mxu0 0.0
        %1530 = vmatprep.subr.mxu0 0.0
        %1531 = vmatpush1.msra.mxu0 0.0
        %1532 = vmatprep.subr.mxu0 0.0
        %1533 = vmatpush1.msra.mxu0 0.0
        %1534 = vmatprep.subr.mxu0 0.0
        %1535 = vmatpush1.msra.mxu0 0.0
        %1536 = vmatprep.subr.mxu0 0.0
        %1537 = vmatpush1.msra.mxu0 0.0
        %1538 = vmatprep.mubr.f32.mxu0 0.0
        %v1539 = vand.u32 %v840, 4294901760
        %v1540 = vsub.f32 %v840, %v1539
        %1541 = vmatmul.mubr.f32.gmra.mrb[0].mxu0 %v1540
        %v1542 = vpop.f32.mrb[0].mxu0
        %v1543 = vadd.f32 %v1466, %v1542
        %v1544 = vpop.f32.mrb[0].mxu0
        %v1545 = vadd.f32 %v1468, %v1544
        %1546 = vdwg.mxu0
        %v1547 = vand.u32 %v339, 4294901760
        %1548 = vmatprep.subr.mxu0 %v1547
        %v1549 = vand.u32 %v338, 4294901760
        %1550 = vmatpush1.msra.mxu0 %v1549
        %1551 = vmatprep.subr.mxu0 0.0
        %1552 = vmatpush1.msra.mxu0 0.0
        %1553 = vmatprep.subr.mxu0 0.0
        %1554 = vmatpush1.msra.mxu0 0.0
        %1555 = vmatprep.subr.mxu0 0.0
        %1556 = vmatpush1.msra.mxu0 0.0
        %1557 = vmatprep.subr.mxu0 0.0
        %1558 = vmatpush1.msra.mxu0 0.0
        %1559 = vmatprep.subr.mxu0 0.0
        %1560 = vmatpush1.msra.mxu0 0.0
        %1561 = vmatprep.subr.mxu0 0.0
        %1562 = vmatpush1.msra.mxu0 0.0
        %1563 = vmatprep.subr.mxu0 0.0
        %1564 = vmatpush1.msra.mxu0 0.0
        %1565 = vmatprep.subr.mxu0 0.0
        %1566 = vmatpush1.msra.mxu0 0.0
        %1567 = vmatprep.subr.mxu0 0.0
        %1568 = vmatpush1.msra.mxu0 0.0
        %1569 = vmatprep.subr.mxu0 0.0
        %1570 = vmatpush1.msra.mxu0 0.0
        %1571 = vmatprep.subr.mxu0 0.0
        %1572 = vmatpush1.msra.mxu0 0.0
        %1573 = vmatprep.subr.mxu0 0.0
        %1574 = vmatpush1.msra.mxu0 0.0
        %1575 = vmatprep.subr.mxu0 0.0
        %1576 = vmatpush1.msra.mxu0 0.0
        %1577 = vmatprep.subr.mxu0 0.0
        %1578 = vmatpush1.msra.mxu0 0.0
        %1579 = vmatprep.subr.mxu0 0.0
        %1580 = vmatpush1.msra.mxu0 0.0
        %1581 = vmatprep.subr.mxu0 0.0
        %1582 = vmatpush1.msra.mxu0 0.0
        %1583 = vmatprep.subr.mxu0 0.0
        %1584 = vmatpush1.msra.mxu0 0.0
        %1585 = vmatprep.subr.mxu0 0.0
        %1586 = vmatpush1.msra.mxu0 0.0
        %1587 = vmatprep.subr.mxu0 0.0
        %1588 = vmatpush1.msra.mxu0 0.0
        %1589 = vmatprep.subr.mxu0 0.0
        %1590 = vmatpush1.msra.mxu0 0.0
        %1591 = vmatprep.subr.mxu0 0.0
        %1592 = vmatpush1.msra.mxu0 0.0
        %1593 = vmatprep.subr.mxu0 0.0
        %1594 = vmatpush1.msra.mxu0 0.0
        %1595 = vmatprep.subr.mxu0 0.0
        %1596 = vmatpush1.msra.mxu0 0.0
        %1597 = vmatprep.subr.mxu0 0.0
        %1598 = vmatpush1.msra.mxu0 0.0
        %1599 = vmatprep.subr.mxu0 0.0
        %1600 = vmatpush1.msra.mxu0 0.0
        %1601 = vmatprep.subr.mxu0 0.0
        %1602 = vmatpush1.msra.mxu0 0.0
        %1603 = vmatprep.subr.mxu0 0.0
        %1604 = vmatpush1.msra.mxu0 0.0
        %1605 = vmatprep.subr.mxu0 0.0
        %1606 = vmatpush1.msra.mxu0 0.0
        %1607 = vmatprep.subr.mxu0 0.0
        %1608 = vmatpush1.msra.mxu0 0.0
        %1609 = vmatprep.subr.mxu0 0.0
        %1610 = vmatpush1.msra.mxu0 0.0
        %1611 = vmatprep.subr.mxu0 0.0
        %1612 = vmatpush1.msra.mxu0 0.0
        %1613 = vmatprep.mubr.f32.mxu0 0.0
        %v1614 = vand.u32 %v840, 4294901760
        %v1615 = vsub.f32 %v840, %v1614
        %v1616 = vand.u32 %v1615, 4294901760
        %1617 = vmatmul.mubr.f32.gmra.mrb[0].mxu0 %v1616
        %v1618 = vpop.f32.mrb[0].mxu0
        %v1619 = vadd.f32 %v1543, %v1618
        %v1620 = vpop.f32.mrb[0].mxu0
        %v1621 = vadd.f32 %v1545, %v1620
        %1622 = vdwg.mxu0
        %v1623 = vand.u32 %v339, 4294901760
        %v1624 = vsub.f32 %v339, %v1623
        %v1625 = vand.u32 %v1624, 4294901760
        %1626 = vmatprep.subr.mxu0 %v1625
        %v1627 = vand.u32 %v338, 4294901760
        %v1628 = vsub.f32 %v338, %v1627
        %v1629 = vand.u32 %v1628, 4294901760
        %1630 = vmatpush1.msra.mxu0 %v1629
        %1631 = vmatprep.subr.mxu0 0.0
        %1632 = vmatpush1.msra.mxu0 0.0
        %1633 = vmatprep.subr.mxu0 0.0
        %1634 = vmatpush1.msra.mxu0 0.0
        %1635 = vmatprep.subr.mxu0 0.0
        %1636 = vmatpush1.msra.mxu0 0.0
        %1637 = vmatprep.subr.mxu0 0.0
        %1638 = vmatpush1.msra.mxu0 0.0
        %1639 = vmatprep.subr.mxu0 0.0
        %1640 = vmatpush1.msra.mxu0 0.0
        %1641 = vmatprep.subr.mxu0 0.0
        %1642 = vmatpush1.msra.mxu0 0.0
        %1643 = vmatprep.subr.mxu0 0.0
        %1644 = vmatpush1.msra.mxu0 0.0
        %1645 = vmatprep.subr.mxu0 0.0
        %1646 = vmatpush1.msra.mxu0 0.0
        %1647 = vmatprep.subr.mxu0 0.0
        %1648 = vmatpush1.msra.mxu0 0.0
        %1649 = vmatprep.subr.mxu0 0.0
        %1650 = vmatpush1.msra.mxu0 0.0
        %1651 = vmatprep.subr.mxu0 0.0
        %1652 = vmatpush1.msra.mxu0 0.0
        %1653 = vmatprep.subr.mxu0 0.0
        %1654 = vmatpush1.msra.mxu0 0.0
        %1655 = vmatprep.subr.mxu0 0.0
        %1656 = vmatpush1.msra.mxu0 0.0
        %1657 = vmatprep.subr.mxu0 0.0
        %1658 = vmatpush1.msra.mxu0 0.0
        %1659 = vmatprep.subr.mxu0 0.0
        %1660 = vmatpush1.msra.mxu0 0.0
        %1661 = vmatprep.subr.mxu0 0.0
        %1662 = vmatpush1.msra.mxu0 0.0
        %1663 = vmatprep.subr.mxu0 0.0
        %1664 = vmatpush1.msra.mxu0 0.0
        %1665 = vmatprep.subr.mxu0 0.0
        %1666 = vmatpush1.msra.mxu0 0.0
        %1667 = vmatprep.subr.mxu0 0.0
        %1668 = vmatpush1.msra.mxu0 0.0
        %1669 = vmatprep.subr.mxu0 0.0
        %1670 = vmatpush1.msra.mxu0 0.0
        %1671 = vmatprep.subr.mxu0 0.0
        %1672 = vmatpush1.msra.mxu0 0.0
        %1673 = vmatprep.subr.mxu0 0.0
        %1674 = vmatpush1.msra.mxu0 0.0
        %1675 = vmatprep.subr.mxu0 0.0
        %1676 = vmatpush1.msra.mxu0 0.0
        %1677 = vmatprep.subr.mxu0 0.0
        %1678 = vmatpush1.msra.mxu0 0.0
        %1679 = vmatprep.subr.mxu0 0.0
        %1680 = vmatpush1.msra.mxu0 0.0
        %1681 = vmatprep.subr.mxu0 0.0
        %1682 = vmatpush1.msra.mxu0 0.0
        %1683 = vmatprep.subr.mxu0 0.0
        %1684 = vmatpush1.msra.mxu0 0.0
        %1685 = vmatprep.subr.mxu0 0.0
        %1686 = vmatpush1.msra.mxu0 0.0
        %1687 = vmatprep.subr.mxu0 0.0
        %1688 = vmatpush1.msra.mxu0 0.0
        %1689 = vmatprep.subr.mxu0 0.0
        %1690 = vmatpush1.msra.mxu0 0.0
        %1691 = vmatprep.subr.mxu0 0.0
        %1692 = vmatpush1.msra.mxu0 0.0
        %1693 = vmatprep.mubr.f32.mxu0 0.0
        %v1694 = vand.u32 %v840, 4294901760
        %1695 = vmatmul.mubr.f32.gmra.mrb[0].mxu0 %v1694
        %v1696 = vpop.f32.mrb[0].mxu0
        %v1697 = vadd.f32 %v1619, %v1696
        %v1698 = vpop.f32.mrb[0].mxu0
        %v1699 = vadd.f32 %v1621, %v1698
        %1700 = vdwg.mxu0
        %v1701 = vand.u32 %v339, 4294901760
        %1702 = vmatprep.subr.mxu0 %v1701
        %v1703 = vand.u32 %v338, 4294901760
        %1704 = vmatpush1.msra.mxu0 %v1703
        %1705 = vmatprep.subr.mxu0 0.0
        %1706 = vmatpush1.msra.mxu0 0.0
        %1707 = vmatprep.subr.mxu0 0.0
        %1708 = vmatpush1.msra.mxu0 0.0
        %1709 = vmatprep.subr.mxu0 0.0
        %1710 = vmatpush1.msra.mxu0 0.0
        %1711 = vmatprep.subr.mxu0 0.0
        %1712 = vmatpush1.msra.mxu0 0.0
        %1713 = vmatprep.subr.mxu0 0.0
        %1714 = vmatpush1.msra.mxu0 0.0
        %1715 = vmatprep.subr.mxu0 0.0
        %1716 = vmatpush1.msra.mxu0 0.0
        %1717 = vmatprep.subr.mxu0 0.0
        %1718 = vmatpush1.msra.mxu0 0.0
        %1719 = vmatprep.subr.mxu0 0.0
        %1720 = vmatpush1.msra.mxu0 0.0
        %1721 = vmatprep.subr.mxu0 0.0
        %1722 = vmatpush1.msra.mxu0 0.0
        %1723 = vmatprep.subr.mxu0 0.0
        %1724 = vmatpush1.msra.mxu0 0.0
        %1725 = vmatprep.subr.mxu0 0.0
        %1726 = vmatpush1.msra.mxu0 0.0
        %1727 = vmatprep.subr.mxu0 0.0
        %1728 = vmatpush1.msra.mxu0 0.0
        %1729 = vmatprep.subr.mxu0 0.0
        %1730 = vmatpush1.msra.mxu0 0.0
        %1731 = vmatprep.subr.mxu0 0.0
        %1732 = vmatpush1.msra.mxu0 0.0
        %1733 = vmatprep.subr.mxu0 0.0
        %1734 = vmatpush1.msra.mxu0 0.0
        %1735 = vmatprep.subr.mxu0 0.0
        %1736 = vmatpush1.msra.mxu0 0.0
        %1737 = vmatprep.subr.mxu0 0.0
        %1738 = vmatpush1.msra.mxu0 0.0
        %1739 = vmatprep.subr.mxu0 0.0
        %1740 = vmatpush1.msra.mxu0 0.0
        %1741 = vmatprep.subr.mxu0 0.0
        %1742 = vmatpush1.msra.mxu0 0.0
        %1743 = vmatprep.subr.mxu0 0.0
        %1744 = vmatpush1.msra.mxu0 0.0
        %1745 = vmatprep.subr.mxu0 0.0
        %1746 = vmatpush1.msra.mxu0 0.0
        %1747 = vmatprep.subr.mxu0 0.0
        %1748 = vmatpush1.msra.mxu0 0.0
        %1749 = vmatprep.subr.mxu0 0.0
        %1750 = vmatpush1.msra.mxu0 0.0
        %1751 = vmatprep.subr.mxu0 0.0
        %1752 = vmatpush1.msra.mxu0 0.0
        %1753 = vmatprep.subr.mxu0 0.0
        %1754 = vmatpush1.msra.mxu0 0.0
        %1755 = vmatprep.subr.mxu0 0.0
        %1756 = vmatpush1.msra.mxu0 0.0
        %1757 = vmatprep.subr.mxu0 0.0
        %1758 = vmatpush1.msra.mxu0 0.0
        %1759 = vmatprep.subr.mxu0 0.0
        %1760 = vmatpush1.msra.mxu0 0.0
        %1761 = vmatprep.subr.mxu0 0.0
        %1762 = vmatpush1.msra.mxu0 0.0
        %1763 = vmatprep.subr.mxu0 0.0
        %1764 = vmatpush1.msra.mxu0 0.0
        %1765 = vmatprep.subr.mxu0 0.0
        %1766 = vmatpush1.msra.mxu0 0.0
        %1767 = vmatprep.mubr.f32.mxu0 0.0
        %v1768 = vand.u32 %v840, 4294901760
        %1769 = vmatmul.mubr.f32.gmra.mrb[0].mxu0 %v1768
        %v1770 = vpop.f32.mrb[0].mxu0
        %v1771 = vadd.f32 %v1697, %v1770
        %v1772 = vpop.f32.mrb[0].mxu0
        %v1773 = vadd.f32 %v1699, %v1772
        %1774 = vdwg.mxu0
        %v1775 = vmul.f32 %v1771, %v1307
        %v1776 = vmul.f32 %v1773, %v1307
        %v1777 = vld [vmem:[#allocation3] sm:$0xff]
        %v1778 = vsub.f32 %v1308, %v835
        %v1779 = vsub.f32 %v1309, %v837
        %v1780 = vand.u32 2147483647, %v1778
        %v1781 = vand.u32 2147483647, %v1779
        %vm1782 = vcmp.lt.f32.partialorder %v1780, 1.0
        %vm1783 = vcmp.lt.f32.partialorder %v1781, 1.0
        %v1784 = vmul.f32 %v1780, 0.5
        %v1785 = vmul.f32 %v1781, 0.5
        %v1786 = vmul.f32 %v1784, %v1780
        %v1787 = vmul.f32 %v1785, %v1781
        %v1788 = vsub.f32 %v1780, 0.5
        %v1789 = vsub.f32 %v1781, 0.5
        %v1790 = vsel %vm1782, %v1786, %v1788
        %v1791 = vsel %vm1783, %v1787, %v1789
        %v1792 = vsub.f32 %v1775, %v835
        %v1793 = vsub.f32 %v1776, %v837
        %v1794 = vand.u32 2147483647, %v1792
        %v1795 = vand.u32 2147483647, %v1793
        %vm1796 = vcmp.lt.f32.partialorder %v1794, 1.0
        %vm1797 = vcmp.lt.f32.partialorder %v1795, 1.0
        %v1798 = vmul.f32 %v1794, 0.5
        %v1799 = vmul.f32 %v1795, 0.5
        %v1800 = vmul.f32 %v1798, %v1794
        %v1801 = vmul.f32 %v1799, %v1795
        %v1802 = vsub.f32 %v1794, 0.5
        %v1803 = vsub.f32 %v1795, 0.5
        %v1804 = vsel %vm1796, %v1800, %v1802
        %v1805 = vsel %vm1797, %v1801, %v1803
        %v1806 = vadd.f32 %v1790, %v1804
        %v1807 = vadd.f32 %v1791, %v1805
        %v1808 = vadd.f32 %v1806, %v1807
        %1809 = vadd.xlane.f32.xlu0 %v1808
        %v1810 = vpop.xlane.xlu0 %1809
        %v1811 = vadd.f32 %v1777, %v1810
        %vm1812 = vcmask 7168
        %1813 = vst.msk [vmem:[#allocation3] sm:$0xff] %vm1812, %v1811
        %v1814 = vld [vmem:[#allocation2] sm:$0xff]
        %v1815 = vand.u32 %v837, 4294901760
        %1816 = vmatprep.subr.mxu0 %v1815
        %v1817 = vand.u32 %v835, 4294901760
        %1818 = vmatpush1.xpose.msra.mxu0 %v1817
        %1819 = vmatprep.subr.mxu0 0.0
        %1820 = vmatpush1.xpose.msra.mxu0 0.0
        %1821 = vmatprep.subr.mxu0 0.0
        %1822 = vmatpush1.xpose.msra.mxu0 0.0
        %1823 = vmatprep.subr.mxu0 0.0
        %1824 = vmatpush1.xpose.msra.mxu0 0.0
        %1825 = vmatprep.subr.mxu0 0.0
        %1826 = vmatpush1.xpose.msra.mxu0 0.0
        %1827 = vmatprep.subr.mxu0 0.0
        %1828 = vmatpush1.xpose.msra.mxu0 0.0
        %1829 = vmatprep.subr.mxu0 0.0
        %1830 = vmatpush1.xpose.msra.mxu0 0.0
        %1831 = vmatprep.subr.mxu0 0.0
        %1832 = vmatpush1.xpose.msra.mxu0 0.0
        %1833 = vmatprep.subr.mxu0 0.0
        %1834 = vmatpush1.xpose.msra.mxu0 0.0
        %1835 = vmatprep.subr.mxu0 0.0
        %1836 = vmatpush1.xpose.msra.mxu0 0.0
        %1837 = vmatprep.subr.mxu0 0.0
        %1838 = vmatpush1.xpose.msra.mxu0 0.0
        %1839 = vmatprep.subr.mxu0 0.0
        %1840 = vmatpush1.xpose.msra.mxu0 0.0
        %1841 = vmatprep.subr.mxu0 0.0
        %1842 = vmatpush1.xpose.msra.mxu0 0.0
        %1843 = vmatprep.subr.mxu0 0.0
        %1844 = vmatpush1.xpose.msra.mxu0 0.0
        %1845 = vmatprep.subr.mxu0 0.0
        %1846 = vmatpush1.xpose.msra.mxu0 0.0
        %1847 = vmatprep.subr.mxu0 0.0
        %1848 = vmatpush1.xpose.msra.mxu0 0.0
        %1849 = vmatprep.subr.mxu0 0.0
        %1850 = vmatpush1.xpose.msra.mxu0 0.0
        %1851 = vmatprep.subr.mxu0 0.0
        %1852 = vmatpush1.xpose.msra.mxu0 0.0
        %1853 = vmatprep.subr.mxu0 0.0
        %1854 = vmatpush1.xpose.msra.mxu0 0.0
        %1855 = vmatprep.subr.mxu0 0.0
        %1856 = vmatpush1.xpose.msra.mxu0 0.0
        %1857 = vmatprep.subr.mxu0 0.0
        %1858 = vmatpush1.xpose.msra.mxu0 0.0
        %1859 = vmatprep.subr.mxu0 0.0
        %1860 = vmatpush1.xpose.msra.mxu0 0.0
        %1861 = vmatprep.subr.mxu0 0.0
        %1862 = vmatpush1.xpose.msra.mxu0 0.0
        %1863 = vmatprep.subr.mxu0 0.0
        %1864 = vmatpush1.xpose.msra.mxu0 0.0
        %1865 = vmatprep.subr.mxu0 0.0
        %1866 = vmatpush1.xpose.msra.mxu0 0.0
        %1867 = vmatprep.subr.mxu0 0.0
        %1868 = vmatpush1.xpose.msra.mxu0 0.0
        %1869 = vmatprep.subr.mxu0 0.0
        %1870 = vmatpush1.xpose.msra.mxu0 0.0
        %1871 = vmatprep.subr.mxu0 0.0
        %1872 = vmatpush1.xpose.msra.mxu0 0.0
        %1873 = vmatprep.subr.mxu0 0.0
        %1874 = vmatpush1.xpose.msra.mxu0 0.0
        %1875 = vmatprep.subr.mxu0 0.0
        %1876 = vmatpush1.xpose.msra.mxu0 0.0
        %1877 = vmatprep.subr.mxu0 0.0
        %1878 = vmatpush1.xpose.msra.mxu0 0.0
        %1879 = vmatprep.subr.mxu0 0.0
        %1880 = vmatpush1.xpose.msra.mxu0 0.0
        %v1881 = vand.u32 %v837, 4294901760
        %v1882 = vsub.f32 %v837, %v1881
        %v1883 = vand.u32 %v1882, 4294901760
        %v1884 = vsub.f32 %v1882, %v1883
        %v1885 = vand.u32 %v1884, 4294901760
        %1886 = vmatprep.mubr.f32.mxu0 %v1885
        %v1887 = vand.u32 %v835, 4294901760
        %v1888 = vsub.f32 %v835, %v1887
        %v1889 = vand.u32 %v1888, 4294901760
        %v1890 = vsub.f32 %v1888, %v1889
        %v1891 = vand.u32 %v1890, 4294901760
        %1892 = vmatmul.mubr.f32.gmra.mrb[0].mxu0 %v1891
        %v1893 = vpop.f32.mrb[0].mxu0
        %v1894 = vadd.f32 0.0, %v1893
        %v1895 = vpop.f32.mrb[0].mxu0
        %1896 = vdwg.mxu0
        %v1897 = vand.u32 %v837, 4294901760
        %v1898 = vsub.f32 %v837, %v1897
        %v1899 = vand.u32 %v1898, 4294901760
        %v1900 = vsub.f32 %v1898, %v1899
        %v1901 = vand.u32 %v1900, 4294901760
        %1902 = vmatprep.subr.mxu0 %v1901
        %v1903 = vand.u32 %v835, 4294901760
        %v1904 = vsub.f32 %v835, %v1903
        %v1905 = vand.u32 %v1904, 4294901760
        %v1906 = vsub.f32 %v1904, %v1905
        %v1907 = vand.u32 %v1906, 4294901760
        %1908 = vmatpush1.xpose.msra.mxu0 %v1907
        %1909 = vmatprep.subr.mxu0 0.0
        %1910 = vmatpush1.xpose.msra.mxu0 0.0
        %1911 = vmatprep.subr.mxu0 0.0
        %1912 = vmatpush1.xpose.msra.mxu0 0.0
        %1913 = vmatprep.subr.mxu0 0.0
        %1914 = vmatpush1.xpose.msra.mxu0 0.0
        %1915 = vmatprep.subr.mxu0 0.0
        %1916 = vmatpush1.xpose.msra.mxu0 0.0
        %1917 = vmatprep.subr.mxu0 0.0
        %1918 = vmatpush1.xpose.msra.mxu0 0.0
        %1919 = vmatprep.subr.mxu0 0.0
        %1920 = vmatpush1.xpose.msra.mxu0 0.0
        %1921 = vmatprep.subr.mxu0 0.0
        %1922 = vmatpush1.xpose.msra.mxu0 0.0
        %1923 = vmatprep.subr.mxu0 0.0
        %1924 = vmatpush1.xpose.msra.mxu0 0.0
        %1925 = vmatprep.subr.mxu0 0.0
        %1926 = vmatpush1.xpose.msra.mxu0 0.0
        %1927 = vmatprep.subr.mxu0 0.0
        %1928 = vmatpush1.xpose.msra.mxu0 0.0
        %1929 = vmatprep.subr.mxu0 0.0
        %1930 = vmatpush1.xpose.msra.mxu0 0.0
        %1931 = vmatprep.subr.mxu0 0.0
        %1932 = vmatpush1.xpose.msra.mxu0 0.0
        %1933 = vmatprep.subr.mxu0 0.0
        %1934 = vmatpush1.xpose.msra.mxu0 0.0
        %1935 = vmatprep.subr.mxu0 0.0
        %1936 = vmatpush1.xpose.msra.mxu0 0.0
        %1937 = vmatprep.subr.mxu0 0.0
        %1938 = vmatpush1.xpose.msra.mxu0 0.0
        %1939 = vmatprep.subr.mxu0 0.0
        %1940 = vmatpush1.xpose.msra.mxu0 0.0
        %1941 = vmatprep.subr.mxu0 0.0
        %1942 = vmatpush1.xpose.msra.mxu0 0.0
        %1943 = vmatprep.subr.mxu0 0.0
        %1944 = vmatpush1.xpose.msra.mxu0 0.0
        %1945 = vmatprep.subr.mxu0 0.0
        %1946 = vmatpush1.xpose.msra.mxu0 0.0
        %1947 = vmatprep.subr.mxu0 0.0
        %1948 = vmatpush1.xpose.msra.mxu0 0.0
        %1949 = vmatprep.subr.mxu0 0.0
        %1950 = vmatpush1.xpose.msra.mxu0 0.0
        %1951 = vmatprep.subr.mxu0 0.0
        %1952 = vmatpush1.xpose.msra.mxu0 0.0
        %1953 = vmatprep.subr.mxu0 0.0
        %1954 = vmatpush1.xpose.msra.mxu0 0.0
        %1955 = vmatprep.subr.mxu0 0.0
        %1956 = vmatpush1.xpose.msra.mxu0 0.0
        %1957 = vmatprep.subr.mxu0 0.0
        %1958 = vmatpush1.xpose.msra.mxu0 0.0
        %1959 = vmatprep.subr.mxu0 0.0
        %1960 = vmatpush1.xpose.msra.mxu0 0.0
        %1961 = vmatprep.subr.mxu0 0.0
        %1962 = vmatpush1.xpose.msra.mxu0 0.0
        %1963 = vmatprep.subr.mxu0 0.0
        %1964 = vmatpush1.xpose.msra.mxu0 0.0
        %1965 = vmatprep.subr.mxu0 0.0
        %1966 = vmatpush1.xpose.msra.mxu0 0.0
        %1967 = vmatprep.subr.mxu0 0.0
        %1968 = vmatpush1.xpose.msra.mxu0 0.0
        %1969 = vmatprep.subr.mxu0 0.0
        %1970 = vmatpush1.xpose.msra.mxu0 0.0
        %v1971 = vand.u32 %v837, 4294901760
        %1972 = vmatprep.mubr.f32.mxu0 %v1971
        %v1973 = vand.u32 %v835, 4294901760
        %1974 = vmatmul.mubr.f32.gmra.mrb[0].mxu0 %v1973
        %v1975 = vpop.f32.mrb[0].mxu0
        %v1976 = vadd.f32 %v1894, %v1975
        %v1977 = vpop.f32.mrb[0].mxu0
        %1978 = vdwg.mxu0
        %v1979 = vand.u32 %v837, 4294901760
        %v1980 = vsub.f32 %v837, %v1979
        %1981 = vmatprep.subr.mxu0 %v1980
        %v1982 = vand.u32 %v835, 4294901760
        %v1983 = vsub.f32 %v835, %v1982
        %1984 = vmatpush1.xpose.msra.mxu0 %v1983
        %1985 = vmatprep.subr.mxu0 0.0
        %1986 = vmatpush1.xpose.msra.mxu0 0.0
        %1987 = vmatprep.subr.mxu0 0.0
        %1988 = vmatpush1.xpose.msra.mxu0 0.0
        %1989 = vmatprep.subr.mxu0 0.0
        %1990 = vmatpush1.xpose.msra.mxu0 0.0
        %1991 = vmatprep.subr.mxu0 0.0
        %1992 = vmatpush1.xpose.msra.mxu0 0.0
        %1993 = vmatprep.subr.mxu0 0.0
        %1994 = vmatpush1.xpose.msra.mxu0 0.0
        %1995 = vmatprep.subr.mxu0 0.0
        %1996 = vmatpush1.xpose.msra.mxu0 0.0
        %1997 = vmatprep.subr.mxu0 0.0
        %1998 = vmatpush1.xpose.msra.mxu0 0.0
        %1999 = vmatprep.subr.mxu0 0.0
        %2000 = vmatpush1.xpose.msra.mxu0 0.0
        %2001 = vmatprep.subr.mxu0 0.0
        %2002 = vmatpush1.xpose.msra.mxu0 0.0
        %2003 = vmatprep.subr.mxu0 0.0
        %2004 = vmatpush1.xpose.msra.mxu0 0.0
        %2005 = vmatprep.subr.mxu0 0.0
        %2006 = vmatpush1.xpose.msra.mxu0 0.0
        %2007 = vmatprep.subr.mxu0 0.0
        %2008 = vmatpush1.xpose.msra.mxu0 0.0
        %2009 = vmatprep.subr.mxu0 0.0
        %2010 = vmatpush1.xpose.msra.mxu0 0.0
        %2011 = vmatprep.subr.mxu0 0.0
        %2012 = vmatpush1.xpose.msra.mxu0 0.0
        %2013 = vmatprep.subr.mxu0 0.0
        %2014 = vmatpush1.xpose.msra.mxu0 0.0
        %2015 = vmatprep.subr.mxu0 0.0
        %2016 = vmatpush1.xpose.msra.mxu0 0.0
        %2017 = vmatprep.subr.mxu0 0.0
        %2018 = vmatpush1.xpose.msra.mxu0 0.0
        %2019 = vmatprep.subr.mxu0 0.0
        %2020 = vmatpush1.xpose.msra.mxu0 0.0
        %2021 = vmatprep.subr.mxu0 0.0
        %2022 = vmatpush1.xpose.msra.mxu0 0.0
        %2023 = vmatprep.subr.mxu0 0.0
        %2024 = vmatpush1.xpose.msra.mxu0 0.0
        %2025 = vmatprep.subr.mxu0 0.0
        %2026 = vmatpush1.xpose.msra.mxu0 0.0
        %2027 = vmatprep.subr.mxu0 0.0
        %2028 = vmatpush1.xpose.msra.mxu0 0.0
        %2029 = vmatprep.subr.mxu0 0.0
        %2030 = vmatpush1.xpose.msra.mxu0 0.0
        %2031 = vmatprep.subr.mxu0 0.0
        %2032 = vmatpush1.xpose.msra.mxu0 0.0
        %2033 = vmatprep.subr.mxu0 0.0
        %2034 = vmatpush1.xpose.msra.mxu0 0.0
        %2035 = vmatprep.subr.mxu0 0.0
        %2036 = vmatpush1.xpose.msra.mxu0 0.0
        %2037 = vmatprep.subr.mxu0 0.0
        %2038 = vmatpush1.xpose.msra.mxu0 0.0
        %2039 = vmatprep.subr.mxu0 0.0
        %2040 = vmatpush1.xpose.msra.mxu0 0.0
        %2041 = vmatprep.subr.mxu0 0.0
        %2042 = vmatpush1.xpose.msra.mxu0 0.0
        %2043 = vmatprep.subr.mxu0 0.0
        %2044 = vmatpush1.xpose.msra.mxu0 0.0
        %2045 = vmatprep.subr.mxu0 0.0
        %2046 = vmatpush1.xpose.msra.mxu0 0.0
        %v2047 = vand.u32 %v837, 4294901760
        %v2048 = vsub.f32 %v837, %v2047
        %2049 = vmatprep.mubr.f32.mxu0 %v2048
        %v2050 = vand.u32 %v835, 4294901760
        %v2051 = vsub.f32 %v835, %v2050
        %2052 = vmatmul.mubr.f32.gmra.mrb[0].mxu0 %v2051
        %v2053 = vpop.f32.mrb[0].mxu0
        %v2054 = vadd.f32 %v1976, %v2053
        %v2055 = vpop.f32.mrb[0].mxu0
        %2056 = vdwg.mxu0
        %v2057 = vand.u32 %v837, 4294901760
        %2058 = vmatprep.subr.mxu0 %v2057
        %v2059 = vand.u32 %v835, 4294901760
        %2060 = vmatpush1.xpose.msra.mxu0 %v2059
        %2061 = vmatprep.subr.mxu0 0.0
        %2062 = vmatpush1.xpose.msra.mxu0 0.0
        %2063 = vmatprep.subr.mxu0 0.0
        %2064 = vmatpush1.xpose.msra.mxu0 0.0
        %2065 = vmatprep.subr.mxu0 0.0
        %2066 = vmatpush1.xpose.msra.mxu0 0.0
        %2067 = vmatprep.subr.mxu0 0.0
        %2068 = vmatpush1.xpose.msra.mxu0 0.0
        %2069 = vmatprep.subr.mxu0 0.0
        %2070 = vmatpush1.xpose.msra.mxu0 0.0
        %2071 = vmatprep.subr.mxu0 0.0
        %2072 = vmatpush1.xpose.msra.mxu0 0.0
        %2073 = vmatprep.subr.mxu0 0.0
        %2074 = vmatpush1.xpose.msra.mxu0 0.0
        %2075 = vmatprep.subr.mxu0 0.0
        %2076 = vmatpush1.xpose.msra.mxu0 0.0
        %2077 = vmatprep.subr.mxu0 0.0
        %2078 = vmatpush1.xpose.msra.mxu0 0.0
        %2079 = vmatprep.subr.mxu0 0.0
        %2080 = vmatpush1.xpose.msra.mxu0 0.0
        %2081 = vmatprep.subr.mxu0 0.0
        %2082 = vmatpush1.xpose.msra.mxu0 0.0
        %2083 = vmatprep.subr.mxu0 0.0
        %2084 = vmatpush1.xpose.msra.mxu0 0.0
        %2085 = vmatprep.subr.mxu0 0.0
        %2086 = vmatpush1.xpose.msra.mxu0 0.0
        %2087 = vmatprep.subr.mxu0 0.0
        %2088 = vmatpush1.xpose.msra.mxu0 0.0
        %2089 = vmatprep.subr.mxu0 0.0
        %2090 = vmatpush1.xpose.msra.mxu0 0.0
        %2091 = vmatprep.subr.mxu0 0.0
        %2092 = vmatpush1.xpose.msra.mxu0 0.0
        %2093 = vmatprep.subr.mxu0 0.0
        %2094 = vmatpush1.xpose.msra.mxu0 0.0
        %2095 = vmatprep.subr.mxu0 0.0
        %2096 = vmatpush1.xpose.msra.mxu0 0.0
        %2097 = vmatprep.subr.mxu0 0.0
        %2098 = vmatpush1.xpose.msra.mxu0 0.0
        %2099 = vmatprep.subr.mxu0 0.0
        %2100 = vmatpush1.xpose.msra.mxu0 0.0
        %2101 = vmatprep.subr.mxu0 0.0
        %2102 = vmatpush1.xpose.msra.mxu0 0.0
        %2103 = vmatprep.subr.mxu0 0.0
        %2104 = vmatpush1.xpose.msra.mxu0 0.0
        %2105 = vmatprep.subr.mxu0 0.0
        %2106 = vmatpush1.xpose.msra.mxu0 0.0
        %2107 = vmatprep.subr.mxu0 0.0
        %2108 = vmatpush1.xpose.msra.mxu0 0.0
        %2109 = vmatprep.subr.mxu0 0.0
        %2110 = vmatpush1.xpose.msra.mxu0 0.0
        %2111 = vmatprep.subr.mxu0 0.0
        %2112 = vmatpush1.xpose.msra.mxu0 0.0
        %2113 = vmatprep.subr.mxu0 0.0
        %2114 = vmatpush1.xpose.msra.mxu0 0.0
        %2115 = vmatprep.subr.mxu0 0.0
        %2116 = vmatpush1.xpose.msra.mxu0 0.0
        %2117 = vmatprep.subr.mxu0 0.0
        %2118 = vmatpush1.xpose.msra.mxu0 0.0
        %2119 = vmatprep.subr.mxu0 0.0
        %2120 = vmatpush1.xpose.msra.mxu0 0.0
        %2121 = vmatprep.subr.mxu0 0.0
        %2122 = vmatpush1.xpose.msra.mxu0 0.0
        %v2123 = vand.u32 %v837, 4294901760
        %v2124 = vsub.f32 %v837, %v2123
        %v2125 = vand.u32 %v2124, 4294901760
        %2126 = vmatprep.mubr.f32.mxu0 %v2125
        %v2127 = vand.u32 %v835, 4294901760
        %v2128 = vsub.f32 %v835, %v2127
        %v2129 = vand.u32 %v2128, 4294901760
        %2130 = vmatmul.mubr.f32.gmra.mrb[0].mxu0 %v2129
        %v2131 = vpop.f32.mrb[0].mxu0
        %v2132 = vadd.f32 %v2054, %v2131
        %v2133 = vpop.f32.mrb[0].mxu0
        %2134 = vdwg.mxu0
        %v2135 = vand.u32 %v837, 4294901760
        %v2136 = vsub.f32 %v837, %v2135
        %v2137 = vand.u32 %v2136, 4294901760
        %2138 = vmatprep.subr.mxu0 %v2137
        %v2139 = vand.u32 %v835, 4294901760
        %v2140 = vsub.f32 %v835, %v2139
        %v2141 = vand.u32 %v2140, 4294901760
        %2142 = vmatpush1.xpose.msra.mxu0 %v2141
        %2143 = vmatprep.subr.mxu0 0.0
        %2144 = vmatpush1.xpose.msra.mxu0 0.0
        %2145 = vmatprep.subr.mxu0 0.0
        %2146 = vmatpush1.xpose.msra.mxu0 0.0
        %2147 = vmatprep.subr.mxu0 0.0
        %2148 = vmatpush1.xpose.msra.mxu0 0.0
        %2149 = vmatprep.subr.mxu0 0.0
        %2150 = vmatpush1.xpose.msra.mxu0 0.0
        %2151 = vmatprep.subr.mxu0 0.0
        %2152 = vmatpush1.xpose.msra.mxu0 0.0
        %2153 = vmatprep.subr.mxu0 0.0
        %2154 = vmatpush1.xpose.msra.mxu0 0.0
        %2155 = vmatprep.subr.mxu0 0.0
        %2156 = vmatpush1.xpose.msra.mxu0 0.0
        %2157 = vmatprep.subr.mxu0 0.0
        %2158 = vmatpush1.xpose.msra.mxu0 0.0
        %2159 = vmatprep.subr.mxu0 0.0
        %2160 = vmatpush1.xpose.msra.mxu0 0.0
        %2161 = vmatprep.subr.mxu0 0.0
        %2162 = vmatpush1.xpose.msra.mxu0 0.0
        %2163 = vmatprep.subr.mxu0 0.0
        %2164 = vmatpush1.xpose.msra.mxu0 0.0
        %2165 = vmatprep.subr.mxu0 0.0
        %2166 = vmatpush1.xpose.msra.mxu0 0.0
        %2167 = vmatprep.subr.mxu0 0.0
        %2168 = vmatpush1.xpose.msra.mxu0 0.0
        %2169 = vmatprep.subr.mxu0 0.0
        %2170 = vmatpush1.xpose.msra.mxu0 0.0
        %2171 = vmatprep.subr.mxu0 0.0
        %2172 = vmatpush1.xpose.msra.mxu0 0.0
        %2173 = vmatprep.subr.mxu0 0.0
        %2174 = vmatpush1.xpose.msra.mxu0 0.0
        %2175 = vmatprep.subr.mxu0 0.0
        %2176 = vmatpush1.xpose.msra.mxu0 0.0
        %2177 = vmatprep.subr.mxu0 0.0
        %2178 = vmatpush1.xpose.msra.mxu0 0.0
        %2179 = vmatprep.subr.mxu0 0.0
        %2180 = vmatpush1.xpose.msra.mxu0 0.0
        %2181 = vmatprep.subr.mxu0 0.0
        %2182 = vmatpush1.xpose.msra.mxu0 0.0
        %2183 = vmatprep.subr.mxu0 0.0
        %2184 = vmatpush1.xpose.msra.mxu0 0.0
        %2185 = vmatprep.subr.mxu0 0.0
        %2186 = vmatpush1.xpose.msra.mxu0 0.0
        %2187 = vmatprep.subr.mxu0 0.0
        %2188 = vmatpush1.xpose.msra.mxu0 0.0
        %2189 = vmatprep.subr.mxu0 0.0
        %2190 = vmatpush1.xpose.msra.mxu0 0.0
        %2191 = vmatprep.subr.mxu0 0.0
        %2192 = vmatpush1.xpose.msra.mxu0 0.0
        %2193 = vmatprep.subr.mxu0 0.0
        %2194 = vmatpush1.xpose.msra.mxu0 0.0
        %2195 = vmatprep.subr.mxu0 0.0
        %2196 = vmatpush1.xpose.msra.mxu0 0.0
        %2197 = vmatprep.subr.mxu0 0.0
        %2198 = vmatpush1.xpose.msra.mxu0 0.0
        %2199 = vmatprep.subr.mxu0 0.0
        %2200 = vmatpush1.xpose.msra.mxu0 0.0
        %2201 = vmatprep.subr.mxu0 0.0
        %2202 = vmatpush1.xpose.msra.mxu0 0.0
        %2203 = vmatprep.subr.mxu0 0.0
        %2204 = vmatpush1.xpose.msra.mxu0 0.0
        %v2205 = vand.u32 %v837, 4294901760
        %2206 = vmatprep.mubr.f32.mxu0 %v2205
        %v2207 = vand.u32 %v835, 4294901760
        %2208 = vmatmul.mubr.f32.gmra.mrb[0].mxu0 %v2207
        %v2209 = vpop.f32.mrb[0].mxu0
        %v2210 = vadd.f32 %v2132, %v2209
        %v2211 = vpop.f32.mrb[0].mxu0
        %2212 = vdwg.mxu0
        %v2213 = vand.u32 %v837, 4294901760
        %2214 = vmatprep.subr.mxu0 %v2213
        %v2215 = vand.u32 %v835, 4294901760
        %2216 = vmatpush1.xpose.msra.mxu0 %v2215
        %2217 = vmatprep.subr.mxu0 0.0
        %2218 = vmatpush1.xpose.msra.mxu0 0.0
        %2219 = vmatprep.subr.mxu0 0.0
        %2220 = vmatpush1.xpose.msra.mxu0 0.0
        %2221 = vmatprep.subr.mxu0 0.0
        %2222 = vmatpush1.xpose.msra.mxu0 0.0
        %2223 = vmatprep.subr.mxu0 0.0
        %2224 = vmatpush1.xpose.msra.mxu0 0.0
        %2225 = vmatprep.subr.mxu0 0.0
        %2226 = vmatpush1.xpose.msra.mxu0 0.0
        %2227 = vmatprep.subr.mxu0 0.0
        %2228 = vmatpush1.xpose.msra.mxu0 0.0
        %2229 = vmatprep.subr.mxu0 0.0
        %2230 = vmatpush1.xpose.msra.mxu0 0.0
        %2231 = vmatprep.subr.mxu0 0.0
        %2232 = vmatpush1.xpose.msra.mxu0 0.0
        %2233 = vmatprep.subr.mxu0 0.0
        %2234 = vmatpush1.xpose.msra.mxu0 0.0
        %2235 = vmatprep.subr.mxu0 0.0
        %2236 = vmatpush1.xpose.msra.mxu0 0.0
        %2237 = vmatprep.subr.mxu0 0.0
        %2238 = vmatpush1.xpose.msra.mxu0 0.0
        %2239 = vmatprep.subr.mxu0 0.0
        %2240 = vmatpush1.xpose.msra.mxu0 0.0
        %2241 = vmatprep.subr.mxu0 0.0
        %2242 = vmatpush1.xpose.msra.mxu0 0.0
        %2243 = vmatprep.subr.mxu0 0.0
        %2244 = vmatpush1.xpose.msra.mxu0 0.0
        %2245 = vmatprep.subr.mxu0 0.0
        %2246 = vmatpush1.xpose.msra.mxu0 0.0
        %2247 = vmatprep.subr.mxu0 0.0
        %2248 = vmatpush1.xpose.msra.mxu0 0.0
        %2249 = vmatprep.subr.mxu0 0.0
        %2250 = vmatpush1.xpose.msra.mxu0 0.0
        %2251 = vmatprep.subr.mxu0 0.0
        %2252 = vmatpush1.xpose.msra.mxu0 0.0
        %2253 = vmatprep.subr.mxu0 0.0
        %2254 = vmatpush1.xpose.msra.mxu0 0.0
        %2255 = vmatprep.subr.mxu0 0.0
        %2256 = vmatpush1.xpose.msra.mxu0 0.0
        %2257 = vmatprep.subr.mxu0 0.0
        %2258 = vmatpush1.xpose.msra.mxu0 0.0
        %2259 = vmatprep.subr.mxu0 0.0
        %2260 = vmatpush1.xpose.msra.mxu0 0.0
        %2261 = vmatprep.subr.mxu0 0.0
        %2262 = vmatpush1.xpose.msra.mxu0 0.0
        %2263 = vmatprep.subr.mxu0 0.0
        %2264 = vmatpush1.xpose.msra.mxu0 0.0
        %2265 = vmatprep.subr.mxu0 0.0
        %2266 = vmatpush1.xpose.msra.mxu0 0.0
        %2267 = vmatprep.subr.mxu0 0.0
        %2268 = vmatpush1.xpose.msra.mxu0 0.0
        %2269 = vmatprep.subr.mxu0 0.0
        %2270 = vmatpush1.xpose.msra.mxu0 0.0
        %2271 = vmatprep.subr.mxu0 0.0
        %2272 = vmatpush1.xpose.msra.mxu0 0.0
        %2273 = vmatprep.subr.mxu0 0.0
        %2274 = vmatpush1.xpose.msra.mxu0 0.0
        %2275 = vmatprep.subr.mxu0 0.0
        %2276 = vmatpush1.xpose.msra.mxu0 0.0
        %2277 = vmatprep.subr.mxu0 0.0
        %2278 = vmatpush1.xpose.msra.mxu0 0.0
        %v2279 = vand.u32 %v837, 4294901760
        %2280 = vmatprep.mubr.f32.mxu0 %v2279
        %v2281 = vand.u32 %v835, 4294901760
        %2282 = vmatmul.mubr.f32.gmra.mrb[0].mxu0 %v2281
        %v2283 = vpop.f32.mrb[0].mxu0
        %v2284 = vadd.f32 %v2210, %v2283
        %v2285 = vpop.f32.mrb[0].mxu0
        %2286 = vdwg.mxu0
        %v2287 = vadd.f32 %v1814, %v2284
        %2288 = vst.msk [vmem:[#allocation2] sm:$0xff] %vm327, %v2287
        %p2289 = scmp.eq.s32.totalorder %s23, 1
        // Predicated region
        $region57: #{tpu_custom_call.1} parent=39 // pred_check
          %p2290 = pneg %p2289
        $region58: #{tpu_custom_call.1} parent=39 // pred_check_branch
          %2292 = sbr.rel (%p2290) target = $region60
        $region59: #{tpu_custom_call.1} parent=39 // pred_region
          %v2293 = vld [vmem:[#allocation2] sm:$0xff]
          %v2294 = vlaneseq
          %v2295 = vshrl.u32 %v2294, 7
          %vm2296 = vcmp.eq.s32.totalorder %v2295, %v332
          %v2297 = vsel %vm2296, 1, 0
          %v2298 = vcvt.s32.f32 %v2297
          %v2299 = vmul.f32 %v2293, %v2298
          %v2300 = vsel %vm327, %v2299, 0.0
          %2301 = vadd.xlane.f32.xlu0 %v2300
          %v2302 = vpop.xlane.xlu0 %2301
          %v2303 = vrot.slane %v2300, 4
          %v2304 = vadd.f32 %v2300, %v2303
          %v2305 = vrot.slane %v2304, 2
          %v2306 = vadd.f32 %v2304, %v2305
          %v2307 = vrot.slane %v2306, 1
          %v2308 = vadd.f32 %v2306, %v2307
          %v2309 = vadd.f32 %v2302, %v2308
          %v2310 = vmul.f32 %v2293, 2.0
          %v2311 = vsub.f32 %v2309, %v2310
          %v2312 = vmax.f32 %v2311, 1e-12
          %v2313 = vrsqrt.pop %v2312
          %v2314 = vmul.f32 %v2312, %v2313
          %vm2315 = vcmp.eq.f32.partialorder %v2312, inf
          %v2316 = vsel %vm2315, %v2312, %v2314
          %vm2317 = vcmp.eq.f32.partialorder %v2312, 0.0
          %v2318 = vand.u32 %v2312, 2147483648
          %v2319 = vsel %vm2317, %v2318, %v2316
          %v2320 = vsub.f32 0.5, %v2319
          %v2321 = vmax.f32 %v2320, 0.0
          %v2322 = vsub.f32 1.0, %v326
          %v2323 = vmul.f32 %v2322, %v2321
          %v2324 = vmul.f32 %v2323, %v2321
          %v2325 = vsel %vm327, %v2324, 0.0
          %2326 = vadd.xlane.f32.xlu0 %v2325
          %v2327 = vpop.xlane.xlu0 %2326
          %v2328 = vrot.slane %v2327, 4
          %v2329 = vadd.f32 %v2327, %v2328
          %v2330 = vrot.slane %v2329, 2
          %v2331 = vadd.f32 %v2329, %v2330
          %v2332 = vrot.slane %v2331, 1
          %v2333 = vadd.f32 %v2331, %v2332
          %s2334 = vtos %v2333
          %s2335 = smul.f32 %s2334, 0.015625
          %v2336 = vld [vmem:[#allocation3] sm:$0xff]
          %v2337 = vsel %vm1812, %v2336, 0.0
          %2338 = vadd.xlane.f32.xlu0 %v2337
          %v2339 = vpop.xlane.xlu0 %2338
          %v2340 = vrot.slane %v2339, 4
          %v2341 = vadd.f32 %v2339, %v2340
          %v2342 = vrot.slane %v2341, 2
          %v2343 = vadd.f32 %v2341, %v2342
          %v2344 = vrot.slane %v2343, 1
          %v2345 = vadd.f32 %v2343, %v2344
          %s2346 = vtos %v2345
          %s2347 = smul.f32 %s2346, 0.00024414063
          %s2348 = sadd.f32 %s2347, %s2335
          %s2349 = scalar_lea.smem [#allocation10], 0
          %2350 = sst [smem:[%s2349]] %s2348
        $region60: #{tpu_custom_call.1} parent=39 // pred_fallthru
          _
        // Predicated region
        $region61: #{tpu_custom_call.1} parent=39 // pred_check
          %p2351 = pneg %p156
        $region62: #{tpu_custom_call.1} parent=39 // pred_check_branch
          %2353 = sbr.rel (%p2351) target = $region64
        $region63: #{tpu_custom_call.1} parent=39 // pred_region
          %s2355 = ssub.s32 16, 16
          %2356 = vsyncadd [#allocation6], %s2355
          %2359 = dma.smem_to_hbm [#allocation10], 16, %s5, [#allocation6]
        $region64: #{tpu_custom_call.1} parent=39 // pred_fallthru
          _
        // Predicated region
        $region65: #{tpu_custom_call.1} parent=39 // pred_check
          %p2360 = pneg %p156
        $region66: #{tpu_custom_call.1} parent=39 // pred_check_branch
          %2362 = sbr.rel (%p2360) target = $region68
        $region67: #{tpu_custom_call.1} parent=39 // pred_region
          %2363 = dma.done [#allocation6], 16
        $region68: #{tpu_custom_call.1} parent=39 // pred_fallthru
          _
        %2364 = sfence
      $region40: #{tpu_custom_call.1} parent=5 // pred_fallthru
        _
      %p2365 = scmp.le.s32.totalorder 2, %s18
      // Predicated region
      $region69: #{tpu_custom_call.1} parent=5 // pred_check
        %p2366 = pneg %p2365
      $region70: #{tpu_custom_call.1} parent=5 // pred_check_branch
        %2368 = sbr.rel (%p2366) target = $region72
      $region71: #{tpu_custom_call.1} parent=5 // pred_region
        %s2369 = ssub.s32 %s18, 2
      $region72: #{tpu_custom_call.1} parent=5 // pred_fallthru
        _
    $region6: #{tpu_custom_call.1} parent=1 // loop_footer
      %s22 = sadd.s32 1, %s18
    $region7: #{tpu_custom_call.1} parent=1 // loop_footer_branch
      %17 = sbr.rel target = $region3
    $region8: #{tpu_custom_call.1} parent=1 // loop_exit
      _
    %2370 = vsyncpa [#allocation5], 1
    %s2371 = scalar_lea.sflag [#allocation5], 1
    %2372 = vsyncpa %s2371, 1
    %2373 = vsyncpa [#allocation8], 1
    %s2374 = scalar_lea.sflag [#allocation8], 1
    %2375 = vsyncpa %s2374, 1
    %2376 = vsyncpa [#allocation6], 1
    %s2377 = scalar_lea.sflag [#allocation6], 1
    %2378 = vsyncpa %s2377, 1

</llo_original>
